<compile_context>
chip_gen: v5e
topology: v5e:2x2
jax: 0.10.0
libtpu: 0.0.40
codegen_flags: <defaults>
</compile_context>

<pallas_src>
import functools
import numpy as np

import jax
import jax.numpy as jnp
from jax.experimental import pallas as pl
from jax.experimental.pallas import tpu as pltpu


# ----------------------------------------------------------------------------- #
# helpers                                                                         #
# ----------------------------------------------------------------------------- #
def _layernorm(x, g, b, eps=1e-5):
    mu = jnp.mean(x, axis=-1, keepdims=True)
    xc = x - mu
    var = jnp.mean(xc * xc, axis=-1, keepdims=True)
    return xc * jax.lax.rsqrt(var + eps) * g + b


# ----------------------------------------------------------------------------- #
# Fused forward kernel: one grid step == K batch elements, everything in VMEM.    #
# ----------------------------------------------------------------------------- #
def fused_forward_kernel(x_ref, ew_ref, eb_ref,
                         wqkv_ref, bqkv_ref, wo_ref,
                         wc1_ref, wc2_ref, vecs_ref,
                         cw_ref, cb_ref, o_ref,
                         *, n_head, n_layers, k_batch, use_norm, apply_sigmoid):
    x = x_ref[...]                                           # (K, T, N)

    # ---- stage 1: instance norm (use_norm) + Pearson correlation ------------- #
    if use_norm:
        mean = jnp.mean(x, axis=1, keepdims=True)            # (K, 1, N)
        xc = x - mean
        var = jnp.mean(xc * xc, axis=1, keepdims=True)       # unbiased=False
        x = xc * jax.lax.rsqrt(var + 1e-5)

    mu = jnp.mean(x, axis=1, keepdims=True)
    xm = x - mu                                              # (K, T, N)
    # diag(xm.T @ xm) is the per-channel sum of squares; normalize columns first
    # so the correlation falls out of one matmul per item.
    d = jnp.sum(xm * xm, axis=1, keepdims=True)              # (K, 1, N)
    xn = xm * jax.lax.rsqrt(d)                               # column-normalized

    corrs = []
    for k in range(k_batch):                                 # static, K small
        xk = xn[k]                                           # (T, N)
        c = jax.lax.dot_general(                             # xk.T @ xk -> (N, N)
            xk, xk, dimension_numbers=(((0,), (0,)), ((), ())),
            preferred_element_type=jnp.float32)
        c = jnp.clip(c, -1.0, 1.0)                           # torch.corrcoef clamps
        c = jnp.where(jnp.isfinite(c), c, 0.0)               # nan_to_num(0,0,0)
        corrs.append(c)
    corr = corrs[0] if k_batch == 1 else jnp.concatenate(corrs, axis=0)   # (K*N, N)

    # ---- stage 2: variate embedding (one matmul for all K items) ------------- #
    h = jnp.dot(corr, ew_ref[...], preferred_element_type=jnp.float32) + eb_ref[...]
    KS, D = h.shape
    S = KS // k_batch
    E = D // n_head
    scale = 1.0 / (float(E) ** 0.5)

    # ---- stage 3: transformer encoder layers (static unrolled) --------------- #
    for l in range(n_layers):
        vecs = vecs_ref[l]                                   # (7, D)
        bo, g1, be1 = vecs[0:1], vecs[1:2], vecs[2:3]
        bc1, bc2 = vecs[3:4], vecs[4:5]
        g2, be2 = vecs[5:6], vecs[6:7]

        # fused QKV projection: one (K*S, D) @ (D, 3D) matmul
        qkv = (jnp.dot(h, wqkv_ref[l], preferred_element_type=jnp.float32)
               + bqkv_ref[l])                                # (K*S, 3D)

        head_outs = []
        for k in range(k_batch):                             # static per-item loop
            r0 = k * S
            item_heads = []
            for hd in range(n_head):                         # static per-head loop
                lo = hd * E
                qh = qkv[r0:r0 + S, lo:lo + E] * scale       # scale folded into q
                kh = qkv[r0:r0 + S, D + lo:D + lo + E]
                vh = qkv[r0:r0 + S, 2 * D + lo:2 * D + lo + E]
                sc = jax.lax.dot_general(                    # qh @ kh.T -> (S, S)
                    qh, kh, dimension_numbers=(((1,), (1,)), ((), ())),
                    preferred_element_type=jnp.float32)
                m = jnp.max(sc, axis=-1, keepdims=True)
                p = jnp.exp(sc - m)
                attn = p / jnp.sum(p, axis=-1, keepdims=True)    # exact (tiny softmax)
                item_heads.append(jnp.dot(attn, vh,
                                          preferred_element_type=jnp.float32))
            head_outs.append(jnp.concatenate(item_heads, axis=1))   # (S, D)
        attn_cat = (head_outs[0] if k_batch == 1
                    else jnp.concatenate(head_outs, axis=0))        # (K*S, D)

        # single output projection for all heads / items
        attn_out = jnp.dot(attn_cat, wo_ref[l],
                           preferred_element_type=jnp.float32) + bo

        h = _layernorm(h + attn_out, g1, be1)                        # norm1
        y = jnp.dot(h, wc1_ref[l], preferred_element_type=jnp.float32) + bc1
        y = jnp.maximum(y, 0.0)                                      # relu
        y = jnp.dot(y, wc2_ref[l], preferred_element_type=jnp.float32) + bc2
        h = _layernorm(h + y, g2, be2)                               # norm2

    # ---- stage 4: mean-pool over variates + classifier ------------------------ #
    pooled = jnp.mean(h.reshape(k_batch, S, D), axis=1)              # (K, D)
    out = jnp.dot(pooled, cw_ref[...], preferred_element_type=jnp.float32) + cb_ref[...]
    if apply_sigmoid:
        out = jax.nn.sigmoid(out)
    o_ref[0] = out                                                   # (K, out_dim)


# ----------------------------------------------------------------------------- #
# Wrapper: pack per-layer params, one pallas_call for the whole model.           #
# ----------------------------------------------------------------------------- #
def model_forward(x, params, *, n_head, use_norm, apply_sigmoid, batch_block=None):
    B, T, N = x.shape
    D = params['embed_w'].shape[1]
    L = len(params['layers'])
    Dff = params['layers'][0]['wc1'].shape[1]
    assert Dff == D, "spec fixes d_ff = d_model"
    out_dim = params['cls_w'].shape[1]

    # K batch items packed per grid step (sublane packing); keep grid >= 2 when
    # B >= 2 so a v7x chip can split steps across its two TensorCores.
    if batch_block is None:
        batch_block = max(1, min(8, B // 2))
    K = batch_block
    G = pl.cdiv(B, K)
    B_pad = G * K
    if B_pad != B:
        x = jnp.pad(x, ((0, B_pad - B), (0, 0), (0, 0)))

    def stack(name):
        return jnp.stack([lp[name] for lp in params['layers']], axis=0)

    def stack_vec(name):
        return jnp.stack([lp[name].reshape(-1) for lp in params['layers']], axis=0)

    # fused QKV weights / biases
    wqkv = jnp.concatenate([stack('wq'), stack('wk'), stack('wv')], axis=2)   # (L, D, 3D)
    bqkv = jnp.concatenate([stack_vec('bq'), stack_vec('bk'), stack_vec('bv')],
                           axis=1).reshape(L, 1, 3 * D)                       # (L, 1, 3D)
    # pack all remaining per-layer 1xD vectors into one (L, 7, D) tensor
    vecs = jnp.stack([stack_vec('bo'), stack_vec('g1'), stack_vec('be1'),
                      stack_vec('bc1'), stack_vec('bc2'),
                      stack_vec('g2'), stack_vec('be2')], axis=1)             # (L, 7, D)

    weight_args = [
        params['embed_w'], params['embed_b'].reshape(1, D),
        wqkv, bqkv,
        stack('wo'),
        stack('wc1'), stack('wc2'),
        vecs,
        params['cls_w'], params['cls_b'].reshape(1, out_dim),
    ]

    # TODO(synk): for scaled-up configs on v7x (64 MiB VMEM), single-buffer the
    # constant weight specs (pipeline_mode=pl.Buffered(1)) and set vmem_limit_bytes;
    # irrelevant at these sizes.
    def const_spec(arr):
        nd = arr.ndim
        return pl.BlockSpec(arr.shape, lambda g, _nd=nd: (0,) * _nd)

    in_specs = ([pl.BlockSpec((K, T, N), lambda g: (g, 0, 0))] +
                [const_spec(a) for a in weight_args])

    out = pl.pallas_call(
        functools.partial(fused_forward_kernel, n_head=n_head, n_layers=L,
                          k_batch=K, use_norm=use_norm, apply_sigmoid=apply_sigmoid),
        out_shape=jax.ShapeDtypeStruct((G, K, out_dim), jnp.float32),
        grid=(G,),
        in_specs=in_specs,
        out_specs=pl.BlockSpec((1, K, out_dim), lambda g: (g, 0, 0)),
        compiler_params=pltpu.CompilerParams(dimension_semantics=("parallel",)),
    )(x, *weight_args)
    return out.reshape(B_pad, out_dim)[:B]


# ----------------------------------------------------------------------------- #
# Pure-JAX reference (mirrors the PyTorch forward, eval mode)                     #
# ----------------------------------------------------------------------------- #
def ref_forward(x, params, *, n_head, use_norm, apply_sigmoid):
    B, T, N = x.shape
    if use_norm:
        means = jnp.mean(x, axis=1, keepdims=True)
        x = x - means
        stdev = jnp.sqrt(jnp.var(x, axis=1, keepdims=True) + 1e-5)
        x = x / stdev

    def corr(xb):                                            # xb: (T, N)
        xm = xb - jnp.mean(xb, axis=0, keepdims=True)
        cov = xm.T @ xm
        d = jnp.diag(cov)
        c = cov / jnp.sqrt(d[:, None] * d[None, :])
        c = jnp.clip(c, -1.0, 1.0)
        return jnp.where(jnp.isfinite(c), c, 0.0)

    h = jax.vmap(corr)(x) @ params['embed_w'] + params['embed_b']

    def ln(z, g, b):
        mu = jnp.mean(z, axis=-1, keepdims=True)
        var = jnp.mean((z - mu) ** 2, axis=-1, keepdims=True)
        return (z - mu) / jnp.sqrt(var + 1e-5) * g + b

    for p in params['layers']:
        B_, S, D = h.shape
        E = D // n_head
        q = (h @ p['wq'] + p['bq']).reshape(B_, S, n_head, E)
        k = (h @ p['wk'] + p['bk']).reshape(B_, S, n_head, E)
        v = (h @ p['wv'] + p['bv']).reshape(B_, S, n_head, E)
        scores = jnp.einsum('blhe,bshe->bhls', q, k) / jnp.sqrt(E).astype(jnp.float32)
        A = jax.nn.softmax(scores, axis=-1)
        o = jnp.einsum('bhls,bshe->blhe', A, v).reshape(B_, S, D)
        o = o @ p['wo'] + p['bo']
        h = ln(h + o, p['g1'], p['be1'])
        y = jax.nn.relu(h @ p['wc1'] + p['bc1'])
        y = y @ p['wc2'] + p['bc2']
        h = ln(h + y, p['g2'], p['be2'])

    pooled = jnp.mean(h, axis=1)
    out = pooled @ params['cls_w'] + params['cls_b']
    if apply_sigmoid:
        out = jax.nn.sigmoid(out)
    return out


# ----------------------------------------------------------------------------- #
# Deterministic parameter init                                                    #
# ----------------------------------------------------------------------------- #
def init_params(key, N, D, L, out_dim):
    def w(k, shape, scale=0.1):
        return (scale * jax.random.normal(k, shape)).astype(jnp.float32)

    ks = jax.random.split(key, 4)
    params = {
        'embed_w': w(ks[0], (N, D)),
        'embed_b': w(ks[1], (D,), 0.02),
        'cls_w': w(ks[2], (D, out_dim)),
        'cls_b': w(ks[3], (out_dim,), 0.02),
        'layers': [],
    }
    for l in range(L):
        lk = jax.random.split(jax.random.fold_in(key, 100 + l), 12)
        params['layers'].append({
            'wq': w(lk[0], (D, D)), 'bq': w(lk[1], (D,), 0.02),
            'wk': w(lk[2], (D, D)), 'bk': w(lk[3], (D,), 0.02),
            'wv': w(lk[4], (D, D)), 'bv': w(lk[5], (D,), 0.02),
            'wo': w(lk[6], (D, D)), 'bo': w(lk[7], (D,), 0.02),
            'g1': jnp.ones((D,), jnp.float32), 'be1': jnp.zeros((D,), jnp.float32),
            'wc1': w(lk[8], (D, D)), 'bc1': w(lk[9], (D,), 0.02),   # d_ff = d_model
            'wc2': w(lk[10], (D, D)), 'bc2': w(lk[11], (D,), 0.02),
            'g2': jnp.ones((D,), jnp.float32), 'be2': jnp.zeros((D,), jnp.float32),
        })
    return params


if __name__ == "__main__":
    # configs: channel=8, d_model=32, n_head=4, layer=2, classes=2, use_norm=True
    B, T, N = 2, 16, 8
    D, H, L = 32, 4, 2
    classes = 2
    out_dim = 1 if classes == 2 else classes
    use_norm = True
    apply_sigmoid = (out_dim == 1)

    key = jax.random.PRNGKey(0)
    kx, kp = jax.random.split(key)
    x_enc = jax.random.normal(kx, (B, T, N), dtype=jnp.float32)
    params = init_params(kp, N, D, L, out_dim)

    y = model_forward(x_enc, params, n_head=H, use_norm=use_norm,
                      apply_sigmoid=apply_sigmoid)
    y = jax.block_until_ready(y)

    y_ref = ref_forward(x_enc, params, n_head=H, use_norm=use_norm,
                        apply_sigmoid=apply_sigmoid)
    y_ref = jax.block_until_ready(y_ref)

    np.testing.assert_allclose(np.asarray(y), np.asarray(y_ref),
                               rtol=1e-3, atol=1e-3)
    assert y.shape == (B, out_dim)
    print("KERNEL_OK")
</pallas_src>

<mosaic_0001>
module attributes {stable_mosaic.version = 11 : i64} {
  func.func @fused_forward_kernel(%arg0: i32, %arg1: memref<1x16x8xf32, #tpu.memory_space<vmem>>, %arg2: memref<8x32xf32, #tpu.memory_space<vmem>>, %arg3: memref<1x32xf32, #tpu.memory_space<vmem>>, %arg4: memref<2x32x96xf32, #tpu.memory_space<vmem>>, %arg5: memref<2x1x96xf32, #tpu.memory_space<vmem>>, %arg6: memref<2x32x32xf32, #tpu.memory_space<vmem>>, %arg7: memref<2x32x32xf32, #tpu.memory_space<vmem>>, %arg8: memref<2x32x32xf32, #tpu.memory_space<vmem>>, %arg9: memref<2x7x32xf32, #tpu.memory_space<vmem>>, %arg10: memref<32x1xf32, #tpu.memory_space<vmem>>, %arg11: memref<1x1xf32, #tpu.memory_space<vmem>>, %arg12: memref<1x1x1xf32, #tpu.memory_space<vmem>>) attributes {dimension_semantics = [#tpu.dimension_semantics<parallel>], iteration_bounds = array<i64: 2>, scalar_prefetch = 0 : i64, scratch_operands = 0 : i64, tpu.core_type = #tpu.core_type<tc>, window_params = [{transform_indices = @transform_0, window_bounds = array<i64: 1, 16, 8>}, {pipeline_mode = #tpu.pipeline_mode<synchronous>, transform_indices = @transform_1, window_bounds = array<i64: 8, 32>}, {pipeline_mode = #tpu.pipeline_mode<synchronous>, transform_indices = @transform_2, window_bounds = array<i64: 1, 32>}, {pipeline_mode = #tpu.pipeline_mode<synchronous>, transform_indices = @transform_3, window_bounds = array<i64: 2, 32, 96>}, {pipeline_mode = #tpu.pipeline_mode<synchronous>, transform_indices = @transform_4, window_bounds = array<i64: 2, 1, 96>}, {pipeline_mode = #tpu.pipeline_mode<synchronous>, transform_indices = @transform_5, window_bounds = array<i64: 2, 32, 32>}, {pipeline_mode = #tpu.pipeline_mode<synchronous>, transform_indices = @transform_6, window_bounds = array<i64: 2, 32, 32>}, {pipeline_mode = #tpu.pipeline_mode<synchronous>, transform_indices = @transform_7, window_bounds = array<i64: 2, 32, 32>}, {pipeline_mode = #tpu.pipeline_mode<synchronous>, transform_indices = @transform_8, window_bounds = array<i64: 2, 7, 32>}, {pipeline_mode = #tpu.pipeline_mode<synchronous>, transform_indices = @transform_9, window_bounds = array<i64: 32, 1>}, {pipeline_mode = #tpu.pipeline_mode<synchronous>, transform_indices = @transform_10, window_bounds = array<i64: 1, 1>}, {transform_indices = @transform_11, window_bounds = array<i64: 1, 1, 1>}]} {
    %c0 = arith.constant 0 : index
    %c0_0 = arith.constant 0 : index
    %c0_1 = arith.constant 0 : index
    %0 = vector.load %arg1[%c0, %c0_0, %c0_1] : memref<1x16x8xf32, #tpu.memory_space<vmem>>, vector<1x16x8xf32>
    %cst = arith.constant dense<0.000000e+00> : vector<1x8xf32>
    %1 = vector.multi_reduction <add>, %0, %cst [1] : vector<1x16x8xf32> to vector<1x8xf32>
    %2 = vector.shape_cast %1 : vector<1x8xf32> to vector<1x1x8xf32>
    %cst_2 = arith.constant 1.600000e+01 : f32
    %3 = vector.broadcast %cst_2 : f32 to vector<1x1x8xf32>
    %4 = arith.divf %2, %3 : vector<1x1x8xf32>
    %5 = vector.broadcast %4 : vector<1x1x8xf32> to vector<1x16x8xf32>
    %6 = arith.subf %0, %5 : vector<1x16x8xf32>
    %7 = arith.mulf %6, %6 : vector<1x16x8xf32>
    %cst_3 = arith.constant dense<0.000000e+00> : vector<1x8xf32>
    %8 = vector.multi_reduction <add>, %7, %cst_3 [1] : vector<1x16x8xf32> to vector<1x8xf32>
    %9 = vector.shape_cast %8 : vector<1x8xf32> to vector<1x1x8xf32>
    %cst_4 = arith.constant 1.600000e+01 : f32
    %10 = vector.broadcast %cst_4 : f32 to vector<1x1x8xf32>
    %11 = arith.divf %9, %10 : vector<1x1x8xf32>
    %cst_5 = arith.constant 9.99999974E-6 : f32
    %12 = vector.broadcast %cst_5 : f32 to vector<1x1x8xf32>
    %13 = arith.addf %11, %12 : vector<1x1x8xf32>
    %14 = math.rsqrt %13 : vector<1x1x8xf32>
    %15 = vector.broadcast %14 : vector<1x1x8xf32> to vector<1x16x8xf32>
    %16 = arith.mulf %6, %15 : vector<1x16x8xf32>
    %cst_6 = arith.constant dense<0.000000e+00> : vector<1x8xf32>
    %17 = vector.multi_reduction <add>, %16, %cst_6 [1] : vector<1x16x8xf32> to vector<1x8xf32>
    %18 = vector.shape_cast %17 : vector<1x8xf32> to vector<1x1x8xf32>
    %cst_7 = arith.constant 1.600000e+01 : f32
    %19 = vector.broadcast %cst_7 : f32 to vector<1x1x8xf32>
    %20 = arith.divf %18, %19 : vector<1x1x8xf32>
    %21 = vector.broadcast %20 : vector<1x1x8xf32> to vector<1x16x8xf32>
    %22 = arith.subf %16, %21 : vector<1x16x8xf32>
    %23 = arith.mulf %22, %22 : vector<1x16x8xf32>
    %cst_8 = arith.constant dense<0.000000e+00> : vector<1x8xf32>
    %24 = vector.multi_reduction <add>, %23, %cst_8 [1] : vector<1x16x8xf32> to vector<1x8xf32>
    %25 = vector.shape_cast %24 : vector<1x8xf32> to vector<1x1x8xf32>
    %26 = math.rsqrt %25 : vector<1x1x8xf32>
    %27 = vector.broadcast %26 : vector<1x1x8xf32> to vector<1x16x8xf32>
    %28 = arith.mulf %22, %27 : vector<1x16x8xf32>
    %29 = vector.shape_cast %28 : vector<1x16x8xf32> to vector<16x8xf32>
    %cst_9 = arith.constant dense<0.000000e+00> : vector<8x8xf32>
    %30 = tpu.matmul %29, %29, %cst_9 {dimension_numbers = #tpu.dot_dimension_numbers<[0], [0], [1], [1], [0, 1, 1, 1], [], []>} : vector<16x8xf32>, vector<16x8xf32>, vector<8x8xf32> -> vector<8x8xf32>
    %cst_10 = arith.constant -1.000000e+00 : f32
    %cst_11 = arith.constant 1.000000e+00 : f32
    %31 = vector.broadcast %cst_10 : f32 to vector<8x8xf32>
    %32 = arith.maximumf %31, %30 : vector<8x8xf32>
    %33 = vector.broadcast %cst_11 : f32 to vector<8x8xf32>
    %34 = arith.minimumf %33, %32 : vector<8x8xf32>
    %35 = tpu.weird %34 : vector<8x8xf32> -> vector<8x8xi1>
    %cst_12 = arith.constant dense<true> : vector<8x8xi1>
    %36 = arith.xori %35, %cst_12 : vector<8x8xi1>
    %cst_13 = arith.constant 0.000000e+00 : f32
    %37 = vector.broadcast %cst_13 : f32 to vector<8x8xf32>
    %38 = arith.select %36, %34, %37 : vector<8x8xi1>, vector<8x8xf32>
    %c0_14 = arith.constant 0 : index
    %c0_15 = arith.constant 0 : index
    %39 = vector.load %arg2[%c0_14, %c0_15] : memref<8x32xf32, #tpu.memory_space<vmem>>, vector<8x32xf32>
    %cst_16 = arith.constant dense<0.000000e+00> : vector<8x32xf32>
    %40 = tpu.matmul %38, %39, %cst_16 {dimension_numbers = #tpu.dot_dimension_numbers<[1], [0], [0], [1], [0, 0, 1, 1], [], []>} : vector<8x8xf32>, vector<8x32xf32>, vector<8x32xf32> -> vector<8x32xf32>
    %c0_17 = arith.constant 0 : index
    %c0_18 = arith.constant 0 : index
    %41 = vector.load %arg3[%c0_17, %c0_18] : memref<1x32xf32, #tpu.memory_space<vmem>>, vector<1x32xf32>
    %42 = vector.broadcast %41 : vector<1x32xf32> to vector<8x32xf32>
    %43 = arith.addf %40, %42 : vector<8x32xf32>
    %c0_19 = arith.constant 0 : index
    %c0_20 = arith.constant 0 : index
    %c0_21 = arith.constant 0 : index
    %44 = vector.load %arg9[%c0_19, %c0_20, %c0_21] : memref<2x7x32xf32, #tpu.memory_space<vmem>>, vector<1x7x32xf32>
    %45 = vector.shape_cast %44 : vector<1x7x32xf32> to vector<7x32xf32>
    %46 = vector.extract_strided_slice %45 {offsets = [0, 0], sizes = [1, 32], strides = [1, 1]} : vector<7x32xf32> to vector<1x32xf32>
    %47 = vector.extract_strided_slice %45 {offsets = [1, 0], sizes = [1, 32], strides = [1, 1]} : vector<7x32xf32> to vector<1x32xf32>
    %48 = vector.extract_strided_slice %45 {offsets = [2, 0], sizes = [1, 32], strides = [1, 1]} : vector<7x32xf32> to vector<1x32xf32>
    %49 = vector.extract_strided_slice %45 {offsets = [3, 0], sizes = [1, 32], strides = [1, 1]} : vector<7x32xf32> to vector<1x32xf32>
    %50 = vector.extract_strided_slice %45 {offsets = [4, 0], sizes = [1, 32], strides = [1, 1]} : vector<7x32xf32> to vector<1x32xf32>
    %51 = vector.extract_strided_slice %45 {offsets = [5, 0], sizes = [1, 32], strides = [1, 1]} : vector<7x32xf32> to vector<1x32xf32>
    %52 = vector.extract_strided_slice %45 {offsets = [6, 0], sizes = [1, 32], strides = [1, 1]} : vector<7x32xf32> to vector<1x32xf32>
    %c0_22 = arith.constant 0 : index
    %c0_23 = arith.constant 0 : index
    %c0_24 = arith.constant 0 : index
    %53 = vector.load %arg4[%c0_22, %c0_23, %c0_24] : memref<2x32x96xf32, #tpu.memory_space<vmem>>, vector<1x32x96xf32>
    %54 = vector.shape_cast %53 : vector<1x32x96xf32> to vector<32x96xf32>
    %cst_25 = arith.constant dense<0.000000e+00> : vector<8x96xf32>
    %55 = tpu.matmul %43, %54, %cst_25 {dimension_numbers = #tpu.dot_dimension_numbers<[1], [0], [0], [1], [0, 0, 1, 1], [], []>} : vector<8x32xf32>, vector<32x96xf32>, vector<8x96xf32> -> vector<8x96xf32>
    %c0_26 = arith.constant 0 : index
    %c0_27 = arith.constant 0 : index
    %c0_28 = arith.constant 0 : index
    %56 = vector.load %arg5[%c0_26, %c0_27, %c0_28] : memref<2x1x96xf32, #tpu.memory_space<vmem>>, vector<1x1x96xf32>
    %57 = vector.shape_cast %56 : vector<1x1x96xf32> to vector<1x96xf32>
    %58 = vector.broadcast %57 : vector<1x96xf32> to vector<8x96xf32>
    %59 = arith.addf %55, %58 : vector<8x96xf32>
    %60 = vector.extract_strided_slice %59 {offsets = [0, 0], sizes = [8, 8], strides = [1, 1]} : vector<8x96xf32> to vector<8x8xf32>
    %cst_29 = arith.constant 0.353553385 : f32
    %61 = vector.broadcast %cst_29 : f32 to vector<8x8xf32>
    %62 = arith.mulf %60, %61 : vector<8x8xf32>
    %63 = vector.extract_strided_slice %59 {offsets = [0, 32], sizes = [8, 8], strides = [1, 1]} : vector<8x96xf32> to vector<8x8xf32>
    %64 = vector.extract_strided_slice %59 {offsets = [0, 64], sizes = [8, 8], strides = [1, 1]} : vector<8x96xf32> to vector<8x8xf32>
    %cst_30 = arith.constant dense<0.000000e+00> : vector<8x8xf32>
    %65 = tpu.matmul %62, %63, %cst_30 {dimension_numbers = #tpu.dot_dimension_numbers<[1], [1], [0], [0], [0, 0, 1, 0], [], []>} : vector<8x8xf32>, vector<8x8xf32>, vector<8x8xf32> -> vector<8x8xf32>
    %cst_31 = arith.constant dense<0xFF800000> : vector<8xf32>
    %66 = vector.multi_reduction <maximumf>, %65, %cst_31 [1] : vector<8x8xf32> to vector<8xf32>
    %67 = vector.shape_cast %66 : vector<8xf32> to vector<8x1xf32>
    %68 = vector.broadcast %67 : vector<8x1xf32> to vector<8x8xf32>
    %69 = arith.subf %65, %68 : vector<8x8xf32>
    %70 = math.exp %69 : vector<8x8xf32>
    %cst_32 = arith.constant dense<0.000000e+00> : vector<8xf32>
    %71 = vector.multi_reduction <add>, %70, %cst_32 [1] : vector<8x8xf32> to vector<8xf32>
    %72 = vector.shape_cast %71 : vector<8xf32> to vector<8x1xf32>
    %73 = vector.broadcast %72 : vector<8x1xf32> to vector<8x8xf32>
    %74 = arith.divf %70, %73 : vector<8x8xf32>
    %cst_33 = arith.constant dense<0.000000e+00> : vector<8x8xf32>
    %75 = tpu.matmul %74, %64, %cst_33 {dimension_numbers = #tpu.dot_dimension_numbers<[1], [0], [0], [1], [0, 0, 1, 1], [], []>} : vector<8x8xf32>, vector<8x8xf32>, vector<8x8xf32> -> vector<8x8xf32>
    %76 = vector.extract_strided_slice %59 {offsets = [0, 8], sizes = [8, 8], strides = [1, 1]} : vector<8x96xf32> to vector<8x8xf32>
    %cst_34 = arith.constant 0.353553385 : f32
    %77 = vector.broadcast %cst_34 : f32 to vector<8x8xf32>
    %78 = arith.mulf %76, %77 : vector<8x8xf32>
    %79 = vector.extract_strided_slice %59 {offsets = [0, 40], sizes = [8, 8], strides = [1, 1]} : vector<8x96xf32> to vector<8x8xf32>
    %80 = vector.extract_strided_slice %59 {offsets = [0, 72], sizes = [8, 8], strides = [1, 1]} : vector<8x96xf32> to vector<8x8xf32>
    %cst_35 = arith.constant dense<0.000000e+00> : vector<8x8xf32>
    %81 = tpu.matmul %78, %79, %cst_35 {dimension_numbers = #tpu.dot_dimension_numbers<[1], [1], [0], [0], [0, 0, 1, 0], [], []>} : vector<8x8xf32>, vector<8x8xf32>, vector<8x8xf32> -> vector<8x8xf32>
    %cst_36 = arith.constant dense<0xFF800000> : vector<8xf32>
    %82 = vector.multi_reduction <maximumf>, %81, %cst_36 [1] : vector<8x8xf32> to vector<8xf32>
    %83 = vector.shape_cast %82 : vector<8xf32> to vector<8x1xf32>
    %84 = vector.broadcast %83 : vector<8x1xf32> to vector<8x8xf32>
    %85 = arith.subf %81, %84 : vector<8x8xf32>
    %86 = math.exp %85 : vector<8x8xf32>
    %cst_37 = arith.constant dense<0.000000e+00> : vector<8xf32>
    %87 = vector.multi_reduction <add>, %86, %cst_37 [1] : vector<8x8xf32> to vector<8xf32>
    %88 = vector.shape_cast %87 : vector<8xf32> to vector<8x1xf32>
    %89 = vector.broadcast %88 : vector<8x1xf32> to vector<8x8xf32>
    %90 = arith.divf %86, %89 : vector<8x8xf32>
    %cst_38 = arith.constant dense<0.000000e+00> : vector<8x8xf32>
    %91 = tpu.matmul %90, %80, %cst_38 {dimension_numbers = #tpu.dot_dimension_numbers<[1], [0], [0], [1], [0, 0, 1, 1], [], []>} : vector<8x8xf32>, vector<8x8xf32>, vector<8x8xf32> -> vector<8x8xf32>
    %92 = vector.extract_strided_slice %59 {offsets = [0, 16], sizes = [8, 8], strides = [1, 1]} : vector<8x96xf32> to vector<8x8xf32>
    %cst_39 = arith.constant 0.353553385 : f32
    %93 = vector.broadcast %cst_39 : f32 to vector<8x8xf32>
    %94 = arith.mulf %92, %93 : vector<8x8xf32>
    %95 = vector.extract_strided_slice %59 {offsets = [0, 48], sizes = [8, 8], strides = [1, 1]} : vector<8x96xf32> to vector<8x8xf32>
    %96 = vector.extract_strided_slice %59 {offsets = [0, 80], sizes = [8, 8], strides = [1, 1]} : vector<8x96xf32> to vector<8x8xf32>
    %cst_40 = arith.constant dense<0.000000e+00> : vector<8x8xf32>
    %97 = tpu.matmul %94, %95, %cst_40 {dimension_numbers = #tpu.dot_dimension_numbers<[1], [1], [0], [0], [0, 0, 1, 0], [], []>} : vector<8x8xf32>, vector<8x8xf32>, vector<8x8xf32> -> vector<8x8xf32>
    %cst_41 = arith.constant dense<0xFF800000> : vector<8xf32>
    %98 = vector.multi_reduction <maximumf>, %97, %cst_41 [1] : vector<8x8xf32> to vector<8xf32>
    %99 = vector.shape_cast %98 : vector<8xf32> to vector<8x1xf32>
    %100 = vector.broadcast %99 : vector<8x1xf32> to vector<8x8xf32>
    %101 = arith.subf %97, %100 : vector<8x8xf32>
    %102 = math.exp %101 : vector<8x8xf32>
    %cst_42 = arith.constant dense<0.000000e+00> : vector<8xf32>
    %103 = vector.multi_reduction <add>, %102, %cst_42 [1] : vector<8x8xf32> to vector<8xf32>
    %104 = vector.shape_cast %103 : vector<8xf32> to vector<8x1xf32>
    %105 = vector.broadcast %104 : vector<8x1xf32> to vector<8x8xf32>
    %106 = arith.divf %102, %105 : vector<8x8xf32>
    %cst_43 = arith.constant dense<0.000000e+00> : vector<8x8xf32>
    %107 = tpu.matmul %106, %96, %cst_43 {dimension_numbers = #tpu.dot_dimension_numbers<[1], [0], [0], [1], [0, 0, 1, 1], [], []>} : vector<8x8xf32>, vector<8x8xf32>, vector<8x8xf32> -> vector<8x8xf32>
    %108 = vector.extract_strided_slice %59 {offsets = [0, 24], sizes = [8, 8], strides = [1, 1]} : vector<8x96xf32> to vector<8x8xf32>
    %cst_44 = arith.constant 0.353553385 : f32
    %109 = vector.broadcast %cst_44 : f32 to vector<8x8xf32>
    %110 = arith.mulf %108, %109 : vector<8x8xf32>
    %111 = vector.extract_strided_slice %59 {offsets = [0, 56], sizes = [8, 8], strides = [1, 1]} : vector<8x96xf32> to vector<8x8xf32>
    %112 = vector.extract_strided_slice %59 {offsets = [0, 88], sizes = [8, 8], strides = [1, 1]} : vector<8x96xf32> to vector<8x8xf32>
    %cst_45 = arith.constant dense<0.000000e+00> : vector<8x8xf32>
    %113 = tpu.matmul %110, %111, %cst_45 {dimension_numbers = #tpu.dot_dimension_numbers<[1], [1], [0], [0], [0, 0, 1, 0], [], []>} : vector<8x8xf32>, vector<8x8xf32>, vector<8x8xf32> -> vector<8x8xf32>
    %cst_46 = arith.constant dense<0xFF800000> : vector<8xf32>
    %114 = vector.multi_reduction <maximumf>, %113, %cst_46 [1] : vector<8x8xf32> to vector<8xf32>
    %115 = vector.shape_cast %114 : vector<8xf32> to vector<8x1xf32>
    %116 = vector.broadcast %115 : vector<8x1xf32> to vector<8x8xf32>
    %117 = arith.subf %113, %116 : vector<8x8xf32>
    %118 = math.exp %117 : vector<8x8xf32>
    %cst_47 = arith.constant dense<0.000000e+00> : vector<8xf32>
    %119 = vector.multi_reduction <add>, %118, %cst_47 [1] : vector<8x8xf32> to vector<8xf32>
    %120 = vector.shape_cast %119 : vector<8xf32> to vector<8x1xf32>
    %121 = vector.broadcast %120 : vector<8x1xf32> to vector<8x8xf32>
    %122 = arith.divf %118, %121 : vector<8x8xf32>
    %cst_48 = arith.constant dense<0.000000e+00> : vector<8x8xf32>
    %123 = tpu.matmul %122, %112, %cst_48 {dimension_numbers = #tpu.dot_dimension_numbers<[1], [0], [0], [1], [0, 0, 1, 1], [], []>} : vector<8x8xf32>, vector<8x8xf32>, vector<8x8xf32> -> vector<8x8xf32>
    %124 = tpu.concatenate %75, %91, %107, %123 in 1 : vector<8x8xf32>, vector<8x8xf32>, vector<8x8xf32>, vector<8x8xf32> -> vector<8x32xf32>
    %c0_49 = arith.constant 0 : index
    %c0_50 = arith.constant 0 : index
    %c0_51 = arith.constant 0 : index
    %125 = vector.load %arg6[%c0_49, %c0_50, %c0_51] : memref<2x32x32xf32, #tpu.memory_space<vmem>>, vector<1x32x32xf32>
    %126 = vector.shape_cast %125 : vector<1x32x32xf32> to vector<32x32xf32>
    %cst_52 = arith.constant dense<0.000000e+00> : vector<8x32xf32>
    %127 = tpu.matmul %124, %126, %cst_52 {dimension_numbers = #tpu.dot_dimension_numbers<[1], [0], [0], [1], [0, 0, 1, 1], [], []>} : vector<8x32xf32>, vector<32x32xf32>, vector<8x32xf32> -> vector<8x32xf32>
    %128 = vector.broadcast %46 : vector<1x32xf32> to vector<8x32xf32>
    %129 = arith.addf %127, %128 : vector<8x32xf32>
    %130 = arith.addf %43, %129 : vector<8x32xf32>
    %cst_53 = arith.constant dense<0.000000e+00> : vector<8xf32>
    %131 = vector.multi_reduction <add>, %130, %cst_53 [1] : vector<8x32xf32> to vector<8xf32>
    %132 = vector.shape_cast %131 : vector<8xf32> to vector<8x1xf32>
    %cst_54 = arith.constant 3.200000e+01 : f32
    %133 = vector.broadcast %cst_54 : f32 to vector<8x1xf32>
    %134 = arith.divf %132, %133 : vector<8x1xf32>
    %135 = vector.broadcast %134 : vector<8x1xf32> to vector<8x32xf32>
    %136 = arith.subf %130, %135 : vector<8x32xf32>
    %137 = arith.mulf %136, %136 : vector<8x32xf32>
    %cst_55 = arith.constant dense<0.000000e+00> : vector<8xf32>
    %138 = vector.multi_reduction <add>, %137, %cst_55 [1] : vector<8x32xf32> to vector<8xf32>
    %139 = vector.shape_cast %138 : vector<8xf32> to vector<8x1xf32>
    %cst_56 = arith.constant 3.200000e+01 : f32
    %140 = vector.broadcast %cst_56 : f32 to vector<8x1xf32>
    %141 = arith.divf %139, %140 : vector<8x1xf32>
    %cst_57 = arith.constant 9.99999974E-6 : f32
    %142 = vector.broadcast %cst_57 : f32 to vector<8x1xf32>
    %143 = arith.addf %141, %142 : vector<8x1xf32>
    %144 = math.rsqrt %143 : vector<8x1xf32>
    %145 = vector.broadcast %144 : vector<8x1xf32> to vector<8x32xf32>
    %146 = arith.mulf %136, %145 : vector<8x32xf32>
    %147 = vector.broadcast %47 : vector<1x32xf32> to vector<8x32xf32>
    %148 = arith.mulf %146, %147 : vector<8x32xf32>
    %149 = vector.broadcast %48 : vector<1x32xf32> to vector<8x32xf32>
    %150 = arith.addf %148, %149 : vector<8x32xf32>
    %c0_58 = arith.constant 0 : index
    %c0_59 = arith.constant 0 : index
    %c0_60 = arith.constant 0 : index
    %151 = vector.load %arg7[%c0_58, %c0_59, %c0_60] : memref<2x32x32xf32, #tpu.memory_space<vmem>>, vector<1x32x32xf32>
    %152 = vector.shape_cast %151 : vector<1x32x32xf32> to vector<32x32xf32>
    %cst_61 = arith.constant dense<0.000000e+00> : vector<8x32xf32>
    %153 = tpu.matmul %150, %152, %cst_61 {dimension_numbers = #tpu.dot_dimension_numbers<[1], [0], [0], [1], [0, 0, 1, 1], [], []>} : vector<8x32xf32>, vector<32x32xf32>, vector<8x32xf32> -> vector<8x32xf32>
    %154 = vector.broadcast %49 : vector<1x32xf32> to vector<8x32xf32>
    %155 = arith.addf %153, %154 : vector<8x32xf32>
    %cst_62 = arith.constant 0.000000e+00 : f32
    %156 = vector.broadcast %cst_62 : f32 to vector<8x32xf32>
    %157 = arith.maximumf %155, %156 : vector<8x32xf32>
    %c0_63 = arith.constant 0 : index
    %c0_64 = arith.constant 0 : index
    %c0_65 = arith.constant 0 : index
    %158 = vector.load %arg8[%c0_63, %c0_64, %c0_65] : memref<2x32x32xf32, #tpu.memory_space<vmem>>, vector<1x32x32xf32>
    %159 = vector.shape_cast %158 : vector<1x32x32xf32> to vector<32x32xf32>
    %cst_66 = arith.constant dense<0.000000e+00> : vector<8x32xf32>
    %160 = tpu.matmul %157, %159, %cst_66 {dimension_numbers = #tpu.dot_dimension_numbers<[1], [0], [0], [1], [0, 0, 1, 1], [], []>} : vector<8x32xf32>, vector<32x32xf32>, vector<8x32xf32> -> vector<8x32xf32>
    %161 = vector.broadcast %50 : vector<1x32xf32> to vector<8x32xf32>
    %162 = arith.addf %160, %161 : vector<8x32xf32>
    %163 = arith.addf %150, %162 : vector<8x32xf32>
    %cst_67 = arith.constant dense<0.000000e+00> : vector<8xf32>
    %164 = vector.multi_reduction <add>, %163, %cst_67 [1] : vector<8x32xf32> to vector<8xf32>
    %165 = vector.shape_cast %164 : vector<8xf32> to vector<8x1xf32>
    %cst_68 = arith.constant 3.200000e+01 : f32
    %166 = vector.broadcast %cst_68 : f32 to vector<8x1xf32>
    %167 = arith.divf %165, %166 : vector<8x1xf32>
    %168 = vector.broadcast %167 : vector<8x1xf32> to vector<8x32xf32>
    %169 = arith.subf %163, %168 : vector<8x32xf32>
    %170 = arith.mulf %169, %169 : vector<8x32xf32>
    %cst_69 = arith.constant dense<0.000000e+00> : vector<8xf32>
    %171 = vector.multi_reduction <add>, %170, %cst_69 [1] : vector<8x32xf32> to vector<8xf32>
    %172 = vector.shape_cast %171 : vector<8xf32> to vector<8x1xf32>
    %cst_70 = arith.constant 3.200000e+01 : f32
    %173 = vector.broadcast %cst_70 : f32 to vector<8x1xf32>
    %174 = arith.divf %172, %173 : vector<8x1xf32>
    %cst_71 = arith.constant 9.99999974E-6 : f32
    %175 = vector.broadcast %cst_71 : f32 to vector<8x1xf32>
    %176 = arith.addf %174, %175 : vector<8x1xf32>
    %177 = math.rsqrt %176 : vector<8x1xf32>
    %178 = vector.broadcast %177 : vector<8x1xf32> to vector<8x32xf32>
    %179 = arith.mulf %169, %178 : vector<8x32xf32>
    %180 = vector.broadcast %51 : vector<1x32xf32> to vector<8x32xf32>
    %181 = arith.mulf %179, %180 : vector<8x32xf32>
    %182 = vector.broadcast %52 : vector<1x32xf32> to vector<8x32xf32>
    %183 = arith.addf %181, %182 : vector<8x32xf32>
    %c1 = arith.constant 1 : index
    %c0_72 = arith.constant 0 : index
    %c0_73 = arith.constant 0 : index
    %184 = vector.load %arg9[%c1, %c0_72, %c0_73] : memref<2x7x32xf32, #tpu.memory_space<vmem>>, vector<1x7x32xf32>
    %185 = vector.shape_cast %184 : vector<1x7x32xf32> to vector<7x32xf32>
    %186 = vector.extract_strided_slice %185 {offsets = [0, 0], sizes = [1, 32], strides = [1, 1]} : vector<7x32xf32> to vector<1x32xf32>
    %187 = vector.extract_strided_slice %185 {offsets = [1, 0], sizes = [1, 32], strides = [1, 1]} : vector<7x32xf32> to vector<1x32xf32>
    %188 = vector.extract_strided_slice %185 {offsets = [2, 0], sizes = [1, 32], strides = [1, 1]} : vector<7x32xf32> to vector<1x32xf32>
    %189 = vector.extract_strided_slice %185 {offsets = [3, 0], sizes = [1, 32], strides = [1, 1]} : vector<7x32xf32> to vector<1x32xf32>
    %190 = vector.extract_strided_slice %185 {offsets = [4, 0], sizes = [1, 32], strides = [1, 1]} : vector<7x32xf32> to vector<1x32xf32>
    %191 = vector.extract_strided_slice %185 {offsets = [5, 0], sizes = [1, 32], strides = [1, 1]} : vector<7x32xf32> to vector<1x32xf32>
    %192 = vector.extract_strided_slice %185 {offsets = [6, 0], sizes = [1, 32], strides = [1, 1]} : vector<7x32xf32> to vector<1x32xf32>
    %c1_74 = arith.constant 1 : index
    %c0_75 = arith.constant 0 : index
    %c0_76 = arith.constant 0 : index
    %193 = vector.load %arg4[%c1_74, %c0_75, %c0_76] : memref<2x32x96xf32, #tpu.memory_space<vmem>>, vector<1x32x96xf32>
    %194 = vector.shape_cast %193 : vector<1x32x96xf32> to vector<32x96xf32>
    %cst_77 = arith.constant dense<0.000000e+00> : vector<8x96xf32>
    %195 = tpu.matmul %183, %194, %cst_77 {dimension_numbers = #tpu.dot_dimension_numbers<[1], [0], [0], [1], [0, 0, 1, 1], [], []>} : vector<8x32xf32>, vector<32x96xf32>, vector<8x96xf32> -> vector<8x96xf32>
    %c1_78 = arith.constant 1 : index
    %c0_79 = arith.constant 0 : index
    %c0_80 = arith.constant 0 : index
    %196 = vector.load %arg5[%c1_78, %c0_79, %c0_80] : memref<2x1x96xf32, #tpu.memory_space<vmem>>, vector<1x1x96xf32>
    %197 = vector.shape_cast %196 : vector<1x1x96xf32> to vector<1x96xf32>
    %198 = vector.broadcast %197 : vector<1x96xf32> to vector<8x96xf32>
    %199 = arith.addf %195, %198 : vector<8x96xf32>
    %200 = vector.extract_strided_slice %199 {offsets = [0, 0], sizes = [8, 8], strides = [1, 1]} : vector<8x96xf32> to vector<8x8xf32>
    %cst_81 = arith.constant 0.353553385 : f32
    %201 = vector.broadcast %cst_81 : f32 to vector<8x8xf32>
    %202 = arith.mulf %200, %201 : vector<8x8xf32>
    %203 = vector.extract_strided_slice %199 {offsets = [0, 32], sizes = [8, 8], strides = [1, 1]} : vector<8x96xf32> to vector<8x8xf32>
    %204 = vector.extract_strided_slice %199 {offsets = [0, 64], sizes = [8, 8], strides = [1, 1]} : vector<8x96xf32> to vector<8x8xf32>
    %cst_82 = arith.constant dense<0.000000e+00> : vector<8x8xf32>
    %205 = tpu.matmul %202, %203, %cst_82 {dimension_numbers = #tpu.dot_dimension_numbers<[1], [1], [0], [0], [0, 0, 1, 0], [], []>} : vector<8x8xf32>, vector<8x8xf32>, vector<8x8xf32> -> vector<8x8xf32>
    %cst_83 = arith.constant dense<0xFF800000> : vector<8xf32>
    %206 = vector.multi_reduction <maximumf>, %205, %cst_83 [1] : vector<8x8xf32> to vector<8xf32>
    %207 = vector.shape_cast %206 : vector<8xf32> to vector<8x1xf32>
    %208 = vector.broadcast %207 : vector<8x1xf32> to vector<8x8xf32>
    %209 = arith.subf %205, %208 : vector<8x8xf32>
    %210 = math.exp %209 : vector<8x8xf32>
    %cst_84 = arith.constant dense<0.000000e+00> : vector<8xf32>
    %211 = vector.multi_reduction <add>, %210, %cst_84 [1] : vector<8x8xf32> to vector<8xf32>
    %212 = vector.shape_cast %211 : vector<8xf32> to vector<8x1xf32>
    %213 = vector.broadcast %212 : vector<8x1xf32> to vector<8x8xf32>
    %214 = arith.divf %210, %213 : vector<8x8xf32>
    %cst_85 = arith.constant dense<0.000000e+00> : vector<8x8xf32>
    %215 = tpu.matmul %214, %204, %cst_85 {dimension_numbers = #tpu.dot_dimension_numbers<[1], [0], [0], [1], [0, 0, 1, 1], [], []>} : vector<8x8xf32>, vector<8x8xf32>, vector<8x8xf32> -> vector<8x8xf32>
    %216 = vector.extract_strided_slice %199 {offsets = [0, 8], sizes = [8, 8], strides = [1, 1]} : vector<8x96xf32> to vector<8x8xf32>
    %cst_86 = arith.constant 0.353553385 : f32
    %217 = vector.broadcast %cst_86 : f32 to vector<8x8xf32>
    %218 = arith.mulf %216, %217 : vector<8x8xf32>
    %219 = vector.extract_strided_slice %199 {offsets = [0, 40], sizes = [8, 8], strides = [1, 1]} : vector<8x96xf32> to vector<8x8xf32>
    %220 = vector.extract_strided_slice %199 {offsets = [0, 72], sizes = [8, 8], strides = [1, 1]} : vector<8x96xf32> to vector<8x8xf32>
    %cst_87 = arith.constant dense<0.000000e+00> : vector<8x8xf32>
    %221 = tpu.matmul %218, %219, %cst_87 {dimension_numbers = #tpu.dot_dimension_numbers<[1], [1], [0], [0], [0, 0, 1, 0], [], []>} : vector<8x8xf32>, vector<8x8xf32>, vector<8x8xf32> -> vector<8x8xf32>
    %cst_88 = arith.constant dense<0xFF800000> : vector<8xf32>
    %222 = vector.multi_reduction <maximumf>, %221, %cst_88 [1] : vector<8x8xf32> to vector<8xf32>
    %223 = vector.shape_cast %222 : vector<8xf32> to vector<8x1xf32>
    %224 = vector.broadcast %223 : vector<8x1xf32> to vector<8x8xf32>
    %225 = arith.subf %221, %224 : vector<8x8xf32>
    %226 = math.exp %225 : vector<8x8xf32>
    %cst_89 = arith.constant dense<0.000000e+00> : vector<8xf32>
    %227 = vector.multi_reduction <add>, %226, %cst_89 [1] : vector<8x8xf32> to vector<8xf32>
    %228 = vector.shape_cast %227 : vector<8xf32> to vector<8x1xf32>
    %229 = vector.broadcast %228 : vector<8x1xf32> to vector<8x8xf32>
    %230 = arith.divf %226, %229 : vector<8x8xf32>
    %cst_90 = arith.constant dense<0.000000e+00> : vector<8x8xf32>
    %231 = tpu.matmul %230, %220, %cst_90 {dimension_numbers = #tpu.dot_dimension_numbers<[1], [0], [0], [1], [0, 0, 1, 1], [], []>} : vector<8x8xf32>, vector<8x8xf32>, vector<8x8xf32> -> vector<8x8xf32>
    %232 = vector.extract_strided_slice %199 {offsets = [0, 16], sizes = [8, 8], strides = [1, 1]} : vector<8x96xf32> to vector<8x8xf32>
    %cst_91 = arith.constant 0.353553385 : f32
    %233 = vector.broadcast %cst_91 : f32 to vector<8x8xf32>
    %234 = arith.mulf %232, %233 : vector<8x8xf32>
    %235 = vector.extract_strided_slice %199 {offsets = [0, 48], sizes = [8, 8], strides = [1, 1]} : vector<8x96xf32> to vector<8x8xf32>
    %236 = vector.extract_strided_slice %199 {offsets = [0, 80], sizes = [8, 8], strides = [1, 1]} : vector<8x96xf32> to vector<8x8xf32>
    %cst_92 = arith.constant dense<0.000000e+00> : vector<8x8xf32>
    %237 = tpu.matmul %234, %235, %cst_92 {dimension_numbers = #tpu.dot_dimension_numbers<[1], [1], [0], [0], [0, 0, 1, 0], [], []>} : vector<8x8xf32>, vector<8x8xf32>, vector<8x8xf32> -> vector<8x8xf32>
    %cst_93 = arith.constant dense<0xFF800000> : vector<8xf32>
    %238 = vector.multi_reduction <maximumf>, %237, %cst_93 [1] : vector<8x8xf32> to vector<8xf32>
    %239 = vector.shape_cast %238 : vector<8xf32> to vector<8x1xf32>
    %240 = vector.broadcast %239 : vector<8x1xf32> to vector<8x8xf32>
    %241 = arith.subf %237, %240 : vector<8x8xf32>
    %242 = math.exp %241 : vector<8x8xf32>
    %cst_94 = arith.constant dense<0.000000e+00> : vector<8xf32>
    %243 = vector.multi_reduction <add>, %242, %cst_94 [1] : vector<8x8xf32> to vector<8xf32>
    %244 = vector.shape_cast %243 : vector<8xf32> to vector<8x1xf32>
    %245 = vector.broadcast %244 : vector<8x1xf32> to vector<8x8xf32>
    %246 = arith.divf %242, %245 : vector<8x8xf32>
    %cst_95 = arith.constant dense<0.000000e+00> : vector<8x8xf32>
    %247 = tpu.matmul %246, %236, %cst_95 {dimension_numbers = #tpu.dot_dimension_numbers<[1], [0], [0], [1], [0, 0, 1, 1], [], []>} : vector<8x8xf32>, vector<8x8xf32>, vector<8x8xf32> -> vector<8x8xf32>
    %248 = vector.extract_strided_slice %199 {offsets = [0, 24], sizes = [8, 8], strides = [1, 1]} : vector<8x96xf32> to vector<8x8xf32>
    %cst_96 = arith.constant 0.353553385 : f32
    %249 = vector.broadcast %cst_96 : f32 to vector<8x8xf32>
    %250 = arith.mulf %248, %249 : vector<8x8xf32>
    %251 = vector.extract_strided_slice %199 {offsets = [0, 56], sizes = [8, 8], strides = [1, 1]} : vector<8x96xf32> to vector<8x8xf32>
    %252 = vector.extract_strided_slice %199 {offsets = [0, 88], sizes = [8, 8], strides = [1, 1]} : vector<8x96xf32> to vector<8x8xf32>
    %cst_97 = arith.constant dense<0.000000e+00> : vector<8x8xf32>
    %253 = tpu.matmul %250, %251, %cst_97 {dimension_numbers = #tpu.dot_dimension_numbers<[1], [1], [0], [0], [0, 0, 1, 0], [], []>} : vector<8x8xf32>, vector<8x8xf32>, vector<8x8xf32> -> vector<8x8xf32>
    %cst_98 = arith.constant dense<0xFF800000> : vector<8xf32>
    %254 = vector.multi_reduction <maximumf>, %253, %cst_98 [1] : vector<8x8xf32> to vector<8xf32>
    %255 = vector.shape_cast %254 : vector<8xf32> to vector<8x1xf32>
    %256 = vector.broadcast %255 : vector<8x1xf32> to vector<8x8xf32>
    %257 = arith.subf %253, %256 : vector<8x8xf32>
    %258 = math.exp %257 : vector<8x8xf32>
    %cst_99 = arith.constant dense<0.000000e+00> : vector<8xf32>
    %259 = vector.multi_reduction <add>, %258, %cst_99 [1] : vector<8x8xf32> to vector<8xf32>
    %260 = vector.shape_cast %259 : vector<8xf32> to vector<8x1xf32>
    %261 = vector.broadcast %260 : vector<8x1xf32> to vector<8x8xf32>
    %262 = arith.divf %258, %261 : vector<8x8xf32>
    %cst_100 = arith.constant dense<0.000000e+00> : vector<8x8xf32>
    %263 = tpu.matmul %262, %252, %cst_100 {dimension_numbers = #tpu.dot_dimension_numbers<[1], [0], [0], [1], [0, 0, 1, 1], [], []>} : vector<8x8xf32>, vector<8x8xf32>, vector<8x8xf32> -> vector<8x8xf32>
    %264 = tpu.concatenate %215, %231, %247, %263 in 1 : vector<8x8xf32>, vector<8x8xf32>, vector<8x8xf32>, vector<8x8xf32> -> vector<8x32xf32>
    %c1_101 = arith.constant 1 : index
    %c0_102 = arith.constant 0 : index
    %c0_103 = arith.constant 0 : index
    %265 = vector.load %arg6[%c1_101, %c0_102, %c0_103] : memref<2x32x32xf32, #tpu.memory_space<vmem>>, vector<1x32x32xf32>
    %266 = vector.shape_cast %265 : vector<1x32x32xf32> to vector<32x32xf32>
    %cst_104 = arith.constant dense<0.000000e+00> : vector<8x32xf32>
    %267 = tpu.matmul %264, %266, %cst_104 {dimension_numbers = #tpu.dot_dimension_numbers<[1], [0], [0], [1], [0, 0, 1, 1], [], []>} : vector<8x32xf32>, vector<32x32xf32>, vector<8x32xf32> -> vector<8x32xf32>
    %268 = vector.broadcast %186 : vector<1x32xf32> to vector<8x32xf32>
    %269 = arith.addf %267, %268 : vector<8x32xf32>
    %270 = arith.addf %183, %269 : vector<8x32xf32>
    %cst_105 = arith.constant dense<0.000000e+00> : vector<8xf32>
    %271 = vector.multi_reduction <add>, %270, %cst_105 [1] : vector<8x32xf32> to vector<8xf32>
    %272 = vector.shape_cast %271 : vector<8xf32> to vector<8x1xf32>
    %cst_106 = arith.constant 3.200000e+01 : f32
    %273 = vector.broadcast %cst_106 : f32 to vector<8x1xf32>
    %274 = arith.divf %272, %273 : vector<8x1xf32>
    %275 = vector.broadcast %274 : vector<8x1xf32> to vector<8x32xf32>
    %276 = arith.subf %270, %275 : vector<8x32xf32>
    %277 = arith.mulf %276, %276 : vector<8x32xf32>
    %cst_107 = arith.constant dense<0.000000e+00> : vector<8xf32>
    %278 = vector.multi_reduction <add>, %277, %cst_107 [1] : vector<8x32xf32> to vector<8xf32>
    %279 = vector.shape_cast %278 : vector<8xf32> to vector<8x1xf32>
    %cst_108 = arith.constant 3.200000e+01 : f32
    %280 = vector.broadcast %cst_108 : f32 to vector<8x1xf32>
    %281 = arith.divf %279, %280 : vector<8x1xf32>
    %cst_109 = arith.constant 9.99999974E-6 : f32
    %282 = vector.broadcast %cst_109 : f32 to vector<8x1xf32>
    %283 = arith.addf %281, %282 : vector<8x1xf32>
    %284 = math.rsqrt %283 : vector<8x1xf32>
    %285 = vector.broadcast %284 : vector<8x1xf32> to vector<8x32xf32>
    %286 = arith.mulf %276, %285 : vector<8x32xf32>
    %287 = vector.broadcast %187 : vector<1x32xf32> to vector<8x32xf32>
    %288 = arith.mulf %286, %287 : vector<8x32xf32>
    %289 = vector.broadcast %188 : vector<1x32xf32> to vector<8x32xf32>
    %290 = arith.addf %288, %289 : vector<8x32xf32>
    %c1_110 = arith.constant 1 : index
    %c0_111 = arith.constant 0 : index
    %c0_112 = arith.constant 0 : index
    %291 = vector.load %arg7[%c1_110, %c0_111, %c0_112] : memref<2x32x32xf32, #tpu.memory_space<vmem>>, vector<1x32x32xf32>
    %292 = vector.shape_cast %291 : vector<1x32x32xf32> to vector<32x32xf32>
    %cst_113 = arith.constant dense<0.000000e+00> : vector<8x32xf32>
    %293 = tpu.matmul %290, %292, %cst_113 {dimension_numbers = #tpu.dot_dimension_numbers<[1], [0], [0], [1], [0, 0, 1, 1], [], []>} : vector<8x32xf32>, vector<32x32xf32>, vector<8x32xf32> -> vector<8x32xf32>
    %294 = vector.broadcast %189 : vector<1x32xf32> to vector<8x32xf32>
    %295 = arith.addf %293, %294 : vector<8x32xf32>
    %cst_114 = arith.constant 0.000000e+00 : f32
    %296 = vector.broadcast %cst_114 : f32 to vector<8x32xf32>
    %297 = arith.maximumf %295, %296 : vector<8x32xf32>
    %c1_115 = arith.constant 1 : index
    %c0_116 = arith.constant 0 : index
    %c0_117 = arith.constant 0 : index
    %298 = vector.load %arg8[%c1_115, %c0_116, %c0_117] : memref<2x32x32xf32, #tpu.memory_space<vmem>>, vector<1x32x32xf32>
    %299 = vector.shape_cast %298 : vector<1x32x32xf32> to vector<32x32xf32>
    %cst_118 = arith.constant dense<0.000000e+00> : vector<8x32xf32>
    %300 = tpu.matmul %297, %299, %cst_118 {dimension_numbers = #tpu.dot_dimension_numbers<[1], [0], [0], [1], [0, 0, 1, 1], [], []>} : vector<8x32xf32>, vector<32x32xf32>, vector<8x32xf32> -> vector<8x32xf32>
    %301 = vector.broadcast %190 : vector<1x32xf32> to vector<8x32xf32>
    %302 = arith.addf %300, %301 : vector<8x32xf32>
    %303 = arith.addf %290, %302 : vector<8x32xf32>
    %cst_119 = arith.constant dense<0.000000e+00> : vector<8xf32>
    %304 = vector.multi_reduction <add>, %303, %cst_119 [1] : vector<8x32xf32> to vector<8xf32>
    %305 = vector.shape_cast %304 : vector<8xf32> to vector<8x1xf32>
    %cst_120 = arith.constant 3.200000e+01 : f32
    %306 = vector.broadcast %cst_120 : f32 to vector<8x1xf32>
    %307 = arith.divf %305, %306 : vector<8x1xf32>
    %308 = vector.broadcast %307 : vector<8x1xf32> to vector<8x32xf32>
    %309 = arith.subf %303, %308 : vector<8x32xf32>
    %310 = arith.mulf %309, %309 : vector<8x32xf32>
    %cst_121 = arith.constant dense<0.000000e+00> : vector<8xf32>
    %311 = vector.multi_reduction <add>, %310, %cst_121 [1] : vector<8x32xf32> to vector<8xf32>
    %312 = vector.shape_cast %311 : vector<8xf32> to vector<8x1xf32>
    %cst_122 = arith.constant 3.200000e+01 : f32
    %313 = vector.broadcast %cst_122 : f32 to vector<8x1xf32>
    %314 = arith.divf %312, %313 : vector<8x1xf32>
    %cst_123 = arith.constant 9.99999974E-6 : f32
    %315 = vector.broadcast %cst_123 : f32 to vector<8x1xf32>
    %316 = arith.addf %314, %315 : vector<8x1xf32>
    %317 = math.rsqrt %316 : vector<8x1xf32>
    %318 = vector.broadcast %317 : vector<8x1xf32> to vector<8x32xf32>
    %319 = arith.mulf %309, %318 : vector<8x32xf32>
    %320 = vector.broadcast %191 : vector<1x32xf32> to vector<8x32xf32>
    %321 = arith.mulf %319, %320 : vector<8x32xf32>
    %322 = vector.broadcast %192 : vector<1x32xf32> to vector<8x32xf32>
    %323 = arith.addf %321, %322 : vector<8x32xf32>
    %324 = vector.shape_cast %323 : vector<8x32xf32> to vector<1x8x32xf32>
    %cst_124 = arith.constant dense<0.000000e+00> : vector<1x32xf32>
    %325 = vector.multi_reduction <add>, %324, %cst_124 [1] : vector<1x8x32xf32> to vector<1x32xf32>
    %cst_125 = arith.constant 8.000000e+00 : f32
    %326 = vector.broadcast %cst_125 : f32 to vector<1x32xf32>
    %327 = arith.divf %325, %326 : vector<1x32xf32>
    %c0_126 = arith.constant 0 : index
    %c0_127 = arith.constant 0 : index
    %328 = vector.load %arg10[%c0_126, %c0_127] : memref<32x1xf32, #tpu.memory_space<vmem>>, vector<32x1xf32>
    %cst_128 = arith.constant dense<0.000000e+00> : vector<1x1xf32>
    %329 = tpu.matmul %327, %328, %cst_128 {dimension_numbers = #tpu.dot_dimension_numbers<[1], [0], [0], [1], [0, 0, 1, 1], [], []>} : vector<1x32xf32>, vector<32x1xf32>, vector<1x1xf32> -> vector<1x1xf32>
    %c0_129 = arith.constant 0 : index
    %c0_130 = arith.constant 0 : index
    %330 = vector.load %arg11[%c0_129, %c0_130] : memref<1x1xf32, #tpu.memory_space<vmem>>, vector<1x1xf32>
    %331 = arith.addf %329, %330 : vector<1x1xf32>
    %332 = arith.negf %331 : vector<1x1xf32>
    %333 = math.exp %332 : vector<1x1xf32>
    %cst_131 = arith.constant 1.000000e+00 : f32
    %334 = vector.broadcast %cst_131 : f32 to vector<1x1xf32>
    %335 = arith.addf %334, %333 : vector<1x1xf32>
    %336 = arith.divf %334, %335 : vector<1x1xf32>
    %c0_132 = arith.constant 0 : index
    %c0_133 = arith.constant 0 : index
    %c0_134 = arith.constant 0 : index
    %337 = vector.load %arg12[%c0_132, %c0_133, %c0_134] : memref<1x1x1xf32, #tpu.memory_space<vmem>>, vector<1x1x1xf32>
    %338 = vector.shape_cast %337 : vector<1x1x1xf32> to vector<1x1xf32>
    %339 = vector.shape_cast %336 : vector<1x1xf32> to vector<1x1x1xf32>
    tpu.vector_store %arg12[%c0_132, %c0_133, %c0_134], %339 {strides = array<i32>} : memref<1x1x1xf32, #tpu.memory_space<vmem>>, vector<1x1x1xf32>,
    return
  }
  func.func @transform_0(%arg0: i32) -> (i32, i32, i32) {
    %c0_i32 = arith.constant 0 : i32
    %c0_i32_0 = arith.constant 0 : i32
    %c0_i32_1 = arith.constant 0 : i32
    return %arg0, %c0_i32, %c0_i32_0 : i32, i32, i32
  }
  func.func @transform_1(%arg0: i32) -> (i32, i32) {
    %c0_i32 = arith.constant 0 : i32
    %c0_i32_0 = arith.constant 0 : i32
    %c0_i32_1 = arith.constant 0 : i32
    return %c0_i32, %c0_i32_0 : i32, i32
  }
  func.func @transform_2(%arg0: i32) -> (i32, i32) {
    %c0_i32 = arith.constant 0 : i32
    %c0_i32_0 = arith.constant 0 : i32
    %c0_i32_1 = arith.constant 0 : i32
    return %c0_i32, %c0_i32_0 : i32, i32
  }
  func.func @transform_3(%arg0: i32) -> (i32, i32, i32) {
    %c0_i32 = arith.constant 0 : i32
    %c0_i32_0 = arith.constant 0 : i32
    %c0_i32_1 = arith.constant 0 : i32
    %c0_i32_2 = arith.constant 0 : i32
    return %c0_i32, %c0_i32_0, %c0_i32_1 : i32, i32, i32
  }
  func.func @transform_4(%arg0: i32) -> (i32, i32, i32) {
    %c0_i32 = arith.constant 0 : i32
    %c0_i32_0 = arith.constant 0 : i32
    %c0_i32_1 = arith.constant 0 : i32
    %c0_i32_2 = arith.constant 0 : i32
    return %c0_i32, %c0_i32_0, %c0_i32_1 : i32, i32, i32
  }
  func.func @transform_5(%arg0: i32) -> (i32, i32, i32) {
    %c0_i32 = arith.constant 0 : i32
    %c0_i32_0 = arith.constant 0 : i32
    %c0_i32_1 = arith.constant 0 : i32
    %c0_i32_2 = arith.constant 0 : i32
    return %c0_i32, %c0_i32_0, %c0_i32_1 : i32, i32, i32
  }
  func.func @transform_6(%arg0: i32) -> (i32, i32, i32) {
    %c0_i32 = arith.constant 0 : i32
    %c0_i32_0 = arith.constant 0 : i32
    %c0_i32_1 = arith.constant 0 : i32
    %c0_i32_2 = arith.constant 0 : i32
    return %c0_i32, %c0_i32_0, %c0_i32_1 : i32, i32, i32
  }
  func.func @transform_7(%arg0: i32) -> (i32, i32, i32) {
    %c0_i32 = arith.constant 0 : i32
    %c0_i32_0 = arith.constant 0 : i32
    %c0_i32_1 = arith.constant 0 : i32
    %c0_i32_2 = arith.constant 0 : i32
    return %c0_i32, %c0_i32_0, %c0_i32_1 : i32, i32, i32
  }
  func.func @transform_8(%arg0: i32) -> (i32, i32, i32) {
    %c0_i32 = arith.constant 0 : i32
    %c0_i32_0 = arith.constant 0 : i32
    %c0_i32_1 = arith.constant 0 : i32
    %c0_i32_2 = arith.constant 0 : i32
    return %c0_i32, %c0_i32_0, %c0_i32_1 : i32, i32, i32
  }
  func.func @transform_9(%arg0: i32) -> (i32, i32) {
    %c0_i32 = arith.constant 0 : i32
    %c0_i32_0 = arith.constant 0 : i32
    %c0_i32_1 = arith.constant 0 : i32
    return %c0_i32, %c0_i32_0 : i32, i32
  }
  func.func @transform_10(%arg0: i32) -> (i32, i32) {
    %c0_i32 = arith.constant 0 : i32
    %c0_i32_0 = arith.constant 0 : i32
    %c0_i32_1 = arith.constant 0 : i32
    return %c0_i32, %c0_i32_0 : i32, i32
  }
  func.func @transform_11(%arg0: i32) -> (i32, i32, i32) {
    %c0_i32 = arith.constant 0 : i32
    %c0_i32_0 = arith.constant 0 : i32
    %c0_i32_1 = arith.constant 0 : i32
    return %arg0, %c0_i32, %c0_i32_0 : i32, i32, i32
  }
}

</mosaic_0001>

<llo_original>
// kernel: tpu_custom_call.1
$region0: #{tpu_custom_call.1}
  #allocation0 [shape = 'u32[]', space=smem, size = 0x4, offset = 0x4, fixed_abs, tag = 'smem constant byte address 0x4 - core index']
  #allocation1 [shape = 'u32[72,128]{1,0:T(1,128)}', space=vmem, size = 0x9000, scoped, tag = 'internal scratch']
  #allocation2 [shape = 'f32[1,1]{1,0:T(1,128)S(1)}', space=vmem, size = 0x200, scoped, tag = 'scoped memory for tpu_custom_call.1']
  %s0 = inlined_call_operand.vmem [shape: f32[2,16,8], index: 0, kind: input, shape index: {}]
  %s1 = inlined_call_operand.vmem [shape: f32[8,32], index: 1, kind: input, shape index: {}]
  %s2 = inlined_call_operand.vmem [shape: f32[1,32], index: 2, kind: input, shape index: {}]
  %s3 = inlined_call_operand.vmem [shape: f32[2,32,96], index: 3, kind: input, shape index: {}]
  %s4 = inlined_call_operand.vmem [shape: f32[2,1,96], index: 4, kind: input, shape index: {}]
  %s5 = inlined_call_operand.hbm [shape: f32[2,32,32], index: 5, kind: input, shape index: {}]
  %s6 = inlined_call_operand.hbm [shape: f32[2,32,32], index: 6, kind: input, shape index: {}]
  %s7 = inlined_call_operand.hbm [shape: f32[2,32,32], index: 7, kind: input, shape index: {}]
  %s8 = inlined_call_operand.vmem [shape: f32[2,7,32], index: 8, kind: input, shape index: {}]
  %s9 = inlined_call_operand.vmem [shape: f32[32,1], index: 9, kind: input, shape index: {}]
  %s10 = inlined_call_operand.<no memory space> [shape: f32[1,1], index: 10, kind: input, shape index: {}]
  %s11 = inlined_call_operand.vmem [shape: f32[2,1,1], index: 11, kind: output, shape index: {}]
  %s12 = sld [smem:[#allocation0]]
  $region89: #{tpu_custom_call.1} parent=0
    _
  %s14 = ssub.s32 1, %s12
  %s15 = scalar_select 0, %s14, %s12
  %v16 = vstv %s10
  %17 = vst [vmem:[#allocation2] sm:$0x1] %v16
  $region1: #{tpu_custom_call.1} parent=0
    #allocation3 [shape = 'u8[32768]{0}', space=vmem, size = 0x8000, scoped, tag = 'input window, operand 5, single buffered']
    #allocation4 [shape = 's32[2]{0}', space=sflag, size = 0x8, scoped, tag = 'scoped memory for tpu_custom_call.1']
    #allocation5 [shape = 'u8[32768]{0}', space=vmem, size = 0x8000, scoped, tag = 'input window, operand 6, single buffered']
    #allocation6 [shape = 's32[1]{0}', space=sflag, size = 0x4, scoped, tag = 'scoped memory for tpu_custom_call.1']
    #allocation7 [shape = 'u8[32768]{0}', space=vmem, size = 0x8000, scoped, tag = 'input window, operand 7, single buffered']
    %18 = vsyncpa [#allocation4], 0
    %19 = vsyncpa [#allocation6], 0
    loop: start=0, step=1, limit=4
    $region2: #{tpu_custom_call.1} parent=1 // loop_pre_header
      _
    $region3: #{tpu_custom_call.1} parent=1 // loop_header
      %s21 = sphi 0, %s25
      %p22 = scmp.ge.s32.totalorder %s21, 4
      %s31 = sphi 0, %s33
      %s34 = sphi 0, %s31
      %s35 = sphi 0, %s34
      %s51 = sphi 0, %s35
      %s55 = sphi 0, %s55
      %s57 = sphi 0, %s55
      %s58 = sphi 0, %s57
      %s72 = sphi 0, %s58
      %s76 = sphi 0, %s76
      %s78 = sphi 0, %s76
      %s79 = sphi 0, %s78
      %s93 = sphi 0, %s79
      %s97 = sphi 0, %s97
      %s99 = sphi 0, %s97
      %s100 = sphi 0, %s99
      %s114 = sphi 0, %s100
      %s118 = sphi 0, %s118
      %s120 = sphi 0, %s118
      %s121 = sphi 0, %s120
      %s135 = sphi 0, %s121
      %s139 = sphi 0, %s139
      %s141 = sphi 0, %s139
      %s142 = sphi 0, %s141
      %s156 = sphi 0, %s142
      %s160 = sphi 0, %s160
      %s162 = sphi 0, %s160
      %s163 = sphi 0, %s162
      %s177 = sphi 0, %s163
      %s181 = sphi 0, %s181
      %s183 = sphi 0, %s181
      %s184 = sphi 0, %s183
      %s198 = sphi 0, %s184
      %s202 = sphi 0, %s202
      %s204 = sphi 0, %s202
      %s205 = sphi 0, %s204
      %s219 = sphi 0, %s205
      %s223 = sphi 0, %s223
      %s225 = sphi 0, %s223
      %s226 = sphi 0, %s225
      %s240 = sphi 0, %s226
      %s244 = sphi 0, %s244
      %s246 = sphi 0, %s244
      %s247 = sphi 0, %s246
      %s261 = sphi 0, %s247
      %s267 = sphi 0, %s269
      %s270 = sphi 0, %s267
      %s271 = sphi 0, %s270
      %s287 = sphi 0, %s271
    $region4: #{tpu_custom_call.1} parent=1 // loop_header_branch
      %24 = sbr.rel (%p22) target = $region8
    $region5: #{tpu_custom_call.1} parent=1 // loop_body
      %s26 = ssub.s32 %s21, 1
      %s27 = ssub.s32 %s21, 2
      %s28 = sadd.s32 %s21, 1
      %s29 = ssub.s32 %s21, %s28
      %p30 = scmp.eq.s32.totalorder %s29, 0
      %s32 = sadd.s32 %s31, 1
      %s33 = scalar_select %p30, %s31, %s32
      %p36 = pneg %p30
      %p37 = scmp.eq.s32.totalorder %s21, 1
      %p38 = por %p36, %p37
      %p39 = scmp.ne.s32.totalorder %s31, %s34
      %p40 = scmp.eq.s32.totalorder %s21, 0
      %p41 = por %p39, %p40
      %p42 = scmp.ne.s32.totalorder %s31, %s34
      %p43 = scmp.eq.s32.totalorder %s26, 1
      %p44 = por %p42, %p43
      %p45 = scmp.ne.s32.totalorder %s34, %s35
      %p46 = scmp.eq.s32.totalorder %s26, 0
      %p47 = por %p45, %p46
      %p48 = scmp.ne.s32.totalorder %s34, %s35
      %p49 = scmp.eq.s32.totalorder %s27, 1
      %p50 = por %p48, %p49
      %p52 = scmp.ne.s32.totalorder %s35, %s51
      %p53 = scmp.eq.s32.totalorder %s27, 0
      %p54 = por %p52, %p53
      %s56 = sadd.s32 %s55, 1
      %p59 = scmp.eq.s32.totalorder %s21, 1
      %p60 = scmp.ne.s32.totalorder %s55, %s57
      %p61 = scmp.eq.s32.totalorder %s21, 0
      %p62 = por %p60, %p61
      %p63 = scmp.ne.s32.totalorder %s55, %s57
      %p64 = scmp.eq.s32.totalorder %s26, 1
      %p65 = por %p63, %p64
      %p66 = scmp.ne.s32.totalorder %s57, %s58
      %p67 = scmp.eq.s32.totalorder %s26, 0
      %p68 = por %p66, %p67
      %p69 = scmp.ne.s32.totalorder %s57, %s58
      %p70 = scmp.eq.s32.totalorder %s27, 1
      %p71 = por %p69, %p70
      %p73 = scmp.ne.s32.totalorder %s58, %s72
      %p74 = scmp.eq.s32.totalorder %s27, 0
      %p75 = por %p73, %p74
      %s77 = sadd.s32 %s76, 1
      %p80 = scmp.eq.s32.totalorder %s21, 1
      %p81 = scmp.ne.s32.totalorder %s76, %s78
      %p82 = scmp.eq.s32.totalorder %s21, 0
      %p83 = por %p81, %p82
      %p84 = scmp.ne.s32.totalorder %s76, %s78
      %p85 = scmp.eq.s32.totalorder %s26, 1
      %p86 = por %p84, %p85
      %p87 = scmp.ne.s32.totalorder %s78, %s79
      %p88 = scmp.eq.s32.totalorder %s26, 0
      %p89 = por %p87, %p88
      %p90 = scmp.ne.s32.totalorder %s78, %s79
      %p91 = scmp.eq.s32.totalorder %s27, 1
      %p92 = por %p90, %p91
      %p94 = scmp.ne.s32.totalorder %s79, %s93
      %p95 = scmp.eq.s32.totalorder %s27, 0
      %p96 = por %p94, %p95
      %s98 = sadd.s32 %s97, 1
      %p101 = scmp.eq.s32.totalorder %s21, 1
      %p102 = scmp.ne.s32.totalorder %s97, %s99
      %p103 = scmp.eq.s32.totalorder %s21, 0
      %p104 = por %p102, %p103
      %p105 = scmp.ne.s32.totalorder %s97, %s99
      %p106 = scmp.eq.s32.totalorder %s26, 1
      %p107 = por %p105, %p106
      %p108 = scmp.ne.s32.totalorder %s99, %s100
      %p109 = scmp.eq.s32.totalorder %s26, 0
      %p110 = por %p108, %p109
      %p111 = scmp.ne.s32.totalorder %s99, %s100
      %p112 = scmp.eq.s32.totalorder %s27, 1
      %p113 = por %p111, %p112
      %p115 = scmp.ne.s32.totalorder %s100, %s114
      %p116 = scmp.eq.s32.totalorder %s27, 0
      %p117 = por %p115, %p116
      %s119 = sadd.s32 %s118, 1
      %p122 = scmp.eq.s32.totalorder %s21, 1
      %p123 = scmp.ne.s32.totalorder %s118, %s120
      %p124 = scmp.eq.s32.totalorder %s21, 0
      %p125 = por %p123, %p124
      %p126 = scmp.ne.s32.totalorder %s118, %s120
      %p127 = scmp.eq.s32.totalorder %s26, 1
      %p128 = por %p126, %p127
      %p129 = scmp.ne.s32.totalorder %s120, %s121
      %p130 = scmp.eq.s32.totalorder %s26, 0
      %p131 = por %p129, %p130
      %p132 = scmp.ne.s32.totalorder %s120, %s121
      %p133 = scmp.eq.s32.totalorder %s27, 1
      %p134 = por %p132, %p133
      %p136 = scmp.ne.s32.totalorder %s121, %s135
      %p137 = scmp.eq.s32.totalorder %s27, 0
      %p138 = por %p136, %p137
      %s140 = sadd.s32 %s139, 1
      %p143 = scmp.eq.s32.totalorder %s21, 1
      %p144 = scmp.ne.s32.totalorder %s139, %s141
      %p145 = scmp.eq.s32.totalorder %s21, 0
      %p146 = por %p144, %p145
      %p147 = scmp.ne.s32.totalorder %s139, %s141
      %p148 = scmp.eq.s32.totalorder %s26, 1
      %p149 = por %p147, %p148
      %p150 = scmp.ne.s32.totalorder %s141, %s142
      %p151 = scmp.eq.s32.totalorder %s26, 0
      %p152 = por %p150, %p151
      %p153 = scmp.ne.s32.totalorder %s141, %s142
      %p154 = scmp.eq.s32.totalorder %s27, 1
      %p155 = por %p153, %p154
      %p157 = scmp.ne.s32.totalorder %s142, %s156
      %p158 = scmp.eq.s32.totalorder %s27, 0
      %p159 = por %p157, %p158
      %s161 = sadd.s32 %s160, 1
      %p164 = scmp.eq.s32.totalorder %s21, 1
      %p165 = scmp.ne.s32.totalorder %s160, %s162
      %p166 = scmp.eq.s32.totalorder %s21, 0
      %p167 = por %p165, %p166
      %p168 = scmp.ne.s32.totalorder %s160, %s162
      %p169 = scmp.eq.s32.totalorder %s26, 1
      %p170 = por %p168, %p169
      %p171 = scmp.ne.s32.totalorder %s162, %s163
      %p172 = scmp.eq.s32.totalorder %s26, 0
      %p173 = por %p171, %p172
      %p174 = scmp.ne.s32.totalorder %s162, %s163
      %p175 = scmp.eq.s32.totalorder %s27, 1
      %p176 = por %p174, %p175
      %p178 = scmp.ne.s32.totalorder %s163, %s177
      %p179 = scmp.eq.s32.totalorder %s27, 0
      %p180 = por %p178, %p179
      %s182 = sadd.s32 %s181, 1
      %p185 = scmp.eq.s32.totalorder %s21, 1
      %p186 = scmp.ne.s32.totalorder %s181, %s183
      %p187 = scmp.eq.s32.totalorder %s21, 0
      %p188 = por %p186, %p187
      %p189 = scmp.ne.s32.totalorder %s181, %s183
      %p190 = scmp.eq.s32.totalorder %s26, 1
      %p191 = por %p189, %p190
      %p192 = scmp.ne.s32.totalorder %s183, %s184
      %p193 = scmp.eq.s32.totalorder %s26, 0
      %p194 = por %p192, %p193
      %p195 = scmp.ne.s32.totalorder %s183, %s184
      %p196 = scmp.eq.s32.totalorder %s27, 1
      %p197 = por %p195, %p196
      %p199 = scmp.ne.s32.totalorder %s184, %s198
      %p200 = scmp.eq.s32.totalorder %s27, 0
      %p201 = por %p199, %p200
      %s203 = sadd.s32 %s202, 1
      %p206 = scmp.eq.s32.totalorder %s21, 1
      %p207 = scmp.ne.s32.totalorder %s202, %s204
      %p208 = scmp.eq.s32.totalorder %s21, 0
      %p209 = por %p207, %p208
      %p210 = scmp.ne.s32.totalorder %s202, %s204
      %p211 = scmp.eq.s32.totalorder %s26, 1
      %p212 = por %p210, %p211
      %p213 = scmp.ne.s32.totalorder %s204, %s205
      %p214 = scmp.eq.s32.totalorder %s26, 0
      %p215 = por %p213, %p214
      %p216 = scmp.ne.s32.totalorder %s204, %s205
      %p217 = scmp.eq.s32.totalorder %s27, 1
      %p218 = por %p216, %p217
      %p220 = scmp.ne.s32.totalorder %s205, %s219
      %p221 = scmp.eq.s32.totalorder %s27, 0
      %p222 = por %p220, %p221
      %s224 = sadd.s32 %s223, 1
      %p227 = scmp.eq.s32.totalorder %s21, 1
      %p228 = scmp.ne.s32.totalorder %s223, %s225
      %p229 = scmp.eq.s32.totalorder %s21, 0
      %p230 = por %p228, %p229
      %p231 = scmp.ne.s32.totalorder %s223, %s225
      %p232 = scmp.eq.s32.totalorder %s26, 1
      %p233 = por %p231, %p232
      %p234 = scmp.ne.s32.totalorder %s225, %s226
      %p235 = scmp.eq.s32.totalorder %s26, 0
      %p236 = por %p234, %p235
      %p237 = scmp.ne.s32.totalorder %s225, %s226
      %p238 = scmp.eq.s32.totalorder %s27, 1
      %p239 = por %p237, %p238
      %p241 = scmp.ne.s32.totalorder %s226, %s240
      %p242 = scmp.eq.s32.totalorder %s27, 0
      %p243 = por %p241, %p242
      %s245 = sadd.s32 %s244, 1
      %p248 = scmp.eq.s32.totalorder %s21, 1
      %p249 = scmp.ne.s32.totalorder %s244, %s246
      %p250 = scmp.eq.s32.totalorder %s21, 0
      %p251 = por %p249, %p250
      %p252 = scmp.ne.s32.totalorder %s244, %s246
      %p253 = scmp.eq.s32.totalorder %s26, 1
      %p254 = por %p252, %p253
      %p255 = scmp.ne.s32.totalorder %s246, %s247
      %p256 = scmp.eq.s32.totalorder %s26, 0
      %p257 = por %p255, %p256
      %p258 = scmp.ne.s32.totalorder %s246, %s247
      %p259 = scmp.eq.s32.totalorder %s27, 1
      %p260 = por %p258, %p259
      %p262 = scmp.ne.s32.totalorder %s247, %s261
      %p263 = scmp.eq.s32.totalorder %s27, 0
      %p264 = por %p262, %p263
      %s265 = ssub.s32 %s21, %s28
      %p266 = scmp.eq.s32.totalorder %s265, 0
      %s268 = sadd.s32 %s267, 1
      %s269 = scalar_select %p266, %s267, %s268
      %p272 = pneg %p266
      %p273 = scmp.eq.s32.totalorder %s21, 1
      %p274 = por %p272, %p273
      %p275 = scmp.ne.s32.totalorder %s267, %s270
      %p276 = scmp.eq.s32.totalorder %s21, 0
      %p277 = por %p275, %p276
      %p278 = scmp.ne.s32.totalorder %s267, %s270
      %p279 = scmp.eq.s32.totalorder %s26, 1
      %p280 = por %p278, %p279
      %p281 = scmp.ne.s32.totalorder %s270, %s271
      %p282 = scmp.eq.s32.totalorder %s26, 0
      %p283 = por %p281, %p282
      %p284 = scmp.ne.s32.totalorder %s270, %s271
      %p285 = scmp.eq.s32.totalorder %s27, 1
      %p286 = por %p284, %p285
      %p288 = scmp.ne.s32.totalorder %s271, %s287
      %p289 = scmp.eq.s32.totalorder %s27, 0
      %p290 = por %p288, %p289
      %p291 = scmp.le.s32.totalorder 1, %s21
      %p292 = scmp.lt.s32.totalorder %s21, 3
      %p293 = pnand %p291, %p292
      %p294 = pneg %p293
      // Predicated region
      $region9: #{tpu_custom_call.1} parent=5 // pred_check
        _
      $region10: #{tpu_custom_call.1} parent=5 // pred_check_branch
        %296 = sbr.rel (%p293) target = $region12
      $region11: #{tpu_custom_call.1} parent=5 // pred_region
        %s297 = ssub.s32 %s21, 1
        // Predicated region
        $region13: #{tpu_custom_call.1} parent=11 // pred_check
          %p298 = pneg %p68
        $region14: #{tpu_custom_call.1} parent=11 // pred_check_branch
          %300 = sbr.rel (%p298) target = $region16
        $region15: #{tpu_custom_call.1} parent=11 // pred_region
          _
        $region16: #{tpu_custom_call.1} parent=11 // pred_fallthru
          _
        // Predicated region
        $region17: #{tpu_custom_call.1} parent=11 // pred_check
          %p301 = pneg %p89
        $region18: #{tpu_custom_call.1} parent=11 // pred_check_branch
          %303 = sbr.rel (%p301) target = $region20
        $region19: #{tpu_custom_call.1} parent=11 // pred_region
          _
        $region20: #{tpu_custom_call.1} parent=11 // pred_fallthru
          _
        // Predicated region
        $region21: #{tpu_custom_call.1} parent=11 // pred_check
          %p304 = pneg %p110
        $region22: #{tpu_custom_call.1} parent=11 // pred_check_branch
          %306 = sbr.rel (%p304) target = $region24
        $region23: #{tpu_custom_call.1} parent=11 // pred_region
          _
        $region24: #{tpu_custom_call.1} parent=11 // pred_fallthru
          _
        // Predicated region
        $region25: #{tpu_custom_call.1} parent=11 // pred_check
          %p307 = pneg %p131
        $region26: #{tpu_custom_call.1} parent=11 // pred_check_branch
          %309 = sbr.rel (%p307) target = $region28
        $region27: #{tpu_custom_call.1} parent=11 // pred_region
          _
        $region28: #{tpu_custom_call.1} parent=11 // pred_fallthru
          _
        // Predicated region
        $region29: #{tpu_custom_call.1} parent=11 // pred_check
          %p310 = pneg %p152
        $region30: #{tpu_custom_call.1} parent=11 // pred_check_branch
          %312 = sbr.rel (%p310) target = $region32
        $region31: #{tpu_custom_call.1} parent=11 // pred_region
          %314 = vsyncadd [#allocation4], 0
          %s315 = sshll.u32 %s5, 4
          %s316 = int_to_ptr.hbm [resolvable:$true] %s315
          %s317 = sshll.u32 [#allocation3], 4
          %s318 = int_to_ptr.vmem [resolvable:$true] %s317
          %323 = dma.hbm_to_vmem [thread:$0]  %s316, 1024, %s318, [#allocation4], 128, 128, 8
        $region32: #{tpu_custom_call.1} parent=11 // pred_fallthru
          _
        // Predicated region
        $region33: #{tpu_custom_call.1} parent=11 // pred_check
          %p324 = pneg %p173
        $region34: #{tpu_custom_call.1} parent=11 // pred_check_branch
          %326 = sbr.rel (%p324) target = $region36
        $region35: #{tpu_custom_call.1} parent=11 // pred_region
          %328 = vsyncadd [#allocation6], 0
          %s329 = sshll.u32 %s6, 4
          %s330 = int_to_ptr.hbm [resolvable:$true] %s329
          %s331 = sshll.u32 [#allocation5], 4
          %s332 = int_to_ptr.vmem [resolvable:$true] %s331
          %337 = dma.hbm_to_vmem [thread:$0]  %s330, 1024, %s332, [#allocation6], 128, 128, 8
        $region36: #{tpu_custom_call.1} parent=11 // pred_fallthru
          _
        // Predicated region
        $region37: #{tpu_custom_call.1} parent=11 // pred_check
          %p338 = pneg %p194
        $region38: #{tpu_custom_call.1} parent=11 // pred_check_branch
          %340 = sbr.rel (%p338) target = $region40
        $region39: #{tpu_custom_call.1} parent=11 // pred_region
          %342 = vsyncadd [#allocation6], 0
          %s343 = sshll.u32 %s7, 4
          %s344 = int_to_ptr.hbm [resolvable:$true] %s343
          %s345 = sshll.u32 [#allocation7], 4
          %s346 = int_to_ptr.vmem [resolvable:$true] %s345
          %351 = dma.hbm_to_vmem [thread:$0]  %s344, 1024, %s346, [#allocation6], 128, 128, 8
        $region40: #{tpu_custom_call.1} parent=11 // pred_fallthru
          _
        // Predicated region
        $region41: #{tpu_custom_call.1} parent=11 // pred_check
          %p352 = pneg %p215
        $region42: #{tpu_custom_call.1} parent=11 // pred_check_branch
          %354 = sbr.rel (%p352) target = $region44
        $region43: #{tpu_custom_call.1} parent=11 // pred_region
          _
        $region44: #{tpu_custom_call.1} parent=11 // pred_fallthru
          _
        // Predicated region
        $region45: #{tpu_custom_call.1} parent=11 // pred_check
          %p355 = pneg %p236
        $region46: #{tpu_custom_call.1} parent=11 // pred_check_branch
          %357 = sbr.rel (%p355) target = $region48
        $region47: #{tpu_custom_call.1} parent=11 // pred_region
          _
        $region48: #{tpu_custom_call.1} parent=11 // pred_fallthru
          _
        // Predicated region
        $region49: #{tpu_custom_call.1} parent=11 // pred_check
          %p358 = pneg %p257
        $region50: #{tpu_custom_call.1} parent=11 // pred_check_branch
          %360 = sbr.rel (%p358) target = $region52
        $region51: #{tpu_custom_call.1} parent=11 // pred_region
          _
        $region52: #{tpu_custom_call.1} parent=11 // pred_fallthru
          _
      $region12: #{tpu_custom_call.1} parent=5 // pred_fallthru
        _
      %p361 = scmp.lt.s32.totalorder %s21, 2
      // Predicated region
      $region53: #{tpu_custom_call.1} parent=5 // pred_check
        %p362 = pneg %p361
      $region54: #{tpu_custom_call.1} parent=5 // pred_check_branch
        %364 = sbr.rel (%p362) target = $region56
      $region55: #{tpu_custom_call.1} parent=5 // pred_region
        // Predicated region
        $region57: #{tpu_custom_call.1} parent=55 // pred_check
          %p365 = pneg %p41
        $region58: #{tpu_custom_call.1} parent=55 // pred_check_branch
          %367 = sbr.rel (%p365) target = $region60
        $region59: #{tpu_custom_call.1} parent=55 // pred_region
          %p368 = scmp.lt.s32.totalorder %s21, 1
          %s369 = scalar_select %p368, %s21, 1
          %s370 = smul.addr %s369, 2
          %s371 = smul.addr %s370, 8
          %s372 = scalar_lea.vmem %s0, %s371
        $region60: #{tpu_custom_call.1} parent=55 // pred_fallthru
          _
      $region56: #{tpu_custom_call.1} parent=5 // pred_fallthru
        _
      %p373 = scmp.le.s32.totalorder 1, %s21
      %p374 = scmp.lt.s32.totalorder %s21, 3
      %p375 = pnand %p373, %p374
      %p376 = pneg %p375
      // Predicated region
      $region61: #{tpu_custom_call.1} parent=5 // pred_check
        _
      $region62: #{tpu_custom_call.1} parent=5 // pred_check_branch
        %378 = sbr.rel (%p375) target = $region64
      $region63: #{tpu_custom_call.1} parent=5 // pred_region
        %s379 = ssub.s32 %s21, 1
        // Predicated region
        $region65: #{tpu_custom_call.1} parent=63 // pred_check
          %p380 = pneg %p152
        $region66: #{tpu_custom_call.1} parent=63 // pred_check_branch
          %382 = sbr.rel (%p380) target = $region68
        $region67: #{tpu_custom_call.1} parent=63 // pred_region
          %384 = dma.done [#allocation4], 1024
        $region68: #{tpu_custom_call.1} parent=63 // pred_fallthru
          _
        // Predicated region
        $region69: #{tpu_custom_call.1} parent=63 // pred_check
          %p385 = pneg %p173
        $region70: #{tpu_custom_call.1} parent=63 // pred_check_branch
          %387 = sbr.rel (%p385) target = $region72
        $region71: #{tpu_custom_call.1} parent=63 // pred_region
          %389 = dma.done [#allocation6], 1024
        $region72: #{tpu_custom_call.1} parent=63 // pred_fallthru
          _
        // Predicated region
        $region73: #{tpu_custom_call.1} parent=63 // pred_check
          %p390 = pneg %p194
        $region74: #{tpu_custom_call.1} parent=63 // pred_check_branch
          %392 = sbr.rel (%p390) target = $region76
        $region75: #{tpu_custom_call.1} parent=63 // pred_region
          %394 = dma.done [#allocation6], 1024
        $region76: #{tpu_custom_call.1} parent=63 // pred_fallthru
          _
        %p395 = scmp.lt.s32.totalorder %s26, 1
        %s396 = scalar_select %p395, %s26, 1
        %s397 = smul.addr %s396, 2
        %s398 = smul.addr %s397, 8
        %s399 = scalar_lea.vmem %s0, %s398
        %p400 = pneg %p47
        %p401 = pneg %p44
        %p402 = pneg %p68
        %p403 = pneg %p65
        %p404 = pneg %p89
        %p405 = pneg %p86
        %p406 = pneg %p110
        %p407 = pneg %p107
        %p408 = pneg %p131
        %p409 = pneg %p128
        %p410 = pneg %p152
        %p411 = pneg %p149
        %p412 = pneg %p173
        %p413 = pneg %p170
        %p414 = pneg %p194
        %p415 = pneg %p191
        %p416 = pneg %p215
        %p417 = pneg %p212
        %p418 = pneg %p236
        %p419 = pneg %p233
        %p420 = pneg %p257
        %p421 = pneg %p254
        %p422 = pneg %p283
        %p423 = pneg %p280
        %p424 = scmp.lt.s32.totalorder %s26, 1
        %s425 = scalar_select %p424, %s26, 1
        %s426 = scalar_lea.vmem %s11, %s425
        %p427 = scmp.lt.s32.totalorder %s26, 1
        %s428 = scalar_select %p427, %s26, 1
        %s429 = smul.addr %s428, 2
        %s430 = smul.addr %s429, 8
        %s431 = scalar_lea.vmem %s0, %s430
        %p432 = scmp.lt.s32.totalorder %s26, 1
        %s433 = scalar_select %p432, %s26, 1
        %s434 = scalar_lea.vmem %s11, %s433
        %v435 = vld [vmem:[%s431] sm:$0xff]
        %v436 = vld [vmem:[%s431 + $0x8] sm:$0xff]
        %vm437 = vcmask 64512
        %v438 = vsel %vm437, %v435, 0.0
        %v439 = vsel %vm437, %v436, 0.0
        %v440 = vadd.f32 %v438, %v439
        %v441 = vrot.slane %v440, 4
        %v442 = vadd.f32 %v440, %v441
        %v443 = vrot.slane %v442, 2
        %v444 = vadd.f32 %v442, %v443
        %v445 = vrot.slane %v444, 1
        %v446 = vadd.f32 %v444, %v445
        %v447 = vrcp.pop 16.0
        %v448 = vmul.f32 16.0, %v447
        %v449 = vsub.f32 1.0, %v448
        %v450 = vmul.f32 %v447, %v449
        %v451 = vadd.f32 %v447, %v450
        %vm452 = vweird.f32 %v447
        %v453 = vsel %vm452, %v447, %v451
        %v454 = vmul.f32 %v446, %v453
        %v455 = vsub.f32 %v435, %v454
        %v456 = vsub.f32 %v436, %v454
        %v457 = vmul.f32 %v455, %v455
        %v458 = vmul.f32 %v456, %v456
        %v459 = vsel %vm437, %v457, 0.0
        %v460 = vsel %vm437, %v458, 0.0
        %v461 = vadd.f32 %v459, %v460
        %v462 = vrot.slane %v461, 4
        %v463 = vadd.f32 %v461, %v462
        %v464 = vrot.slane %v463, 2
        %v465 = vadd.f32 %v463, %v464
        %v466 = vrot.slane %v465, 1
        %v467 = vadd.f32 %v465, %v466
        %v468 = vmul.f32 %v467, %v453
        %v469 = vadd.f32 %v468, 1e-05
        %v470 = vrsqrt.pop %v469
        %v471 = vmul.f32 %v470, %v469
        %v472 = vmul.f32 %v471, %v470
        %v473 = vmul.f32 0.5, %v472
        %v474 = vsub.f32 1.5, %v473
        %v475 = vmul.f32 %v470, %v474
        %vm476 = vweird.f32 %v469
        %vm477 = vweird.f32 %v470
        %vm478 = vmor %vm476, %vm477
        %v479 = vsel %vm478, %v470, %v475
        %v480 = vmul.f32 %v455, %v479
        %v481 = vmul.f32 %v456, %v479
        %v482 = vsel %vm437, %v480, 0.0
        %v483 = vsel %vm437, %v481, 0.0
        %v484 = vadd.f32 %v482, %v483
        %v485 = vrot.slane %v484, 4
        %v486 = vadd.f32 %v484, %v485
        %v487 = vrot.slane %v486, 2
        %v488 = vadd.f32 %v486, %v487
        %v489 = vrot.slane %v488, 1
        %v490 = vadd.f32 %v488, %v489
        %v491 = vmul.f32 %v490, %v453
        %v492 = vsub.f32 %v480, %v491
        %v493 = vsub.f32 %v481, %v491
        %v494 = vmul.f32 %v492, %v492
        %v495 = vmul.f32 %v493, %v493
        %v496 = vsel %vm437, %v494, 0.0
        %v497 = vsel %vm437, %v495, 0.0
        %v498 = vadd.f32 %v496, %v497
        %v499 = vrot.slane %v498, 4
        %v500 = vadd.f32 %v498, %v499
        %v501 = vrot.slane %v500, 2
        %v502 = vadd.f32 %v500, %v501
        %v503 = vrot.slane %v502, 1
        %v504 = vadd.f32 %v502, %v503
        %v505 = vrsqrt.pop %v504
        %v506 = vmul.f32 %v505, %v504
        %v507 = vmul.f32 %v506, %v505
        %v508 = vmul.f32 0.5, %v507
        %v509 = vsub.f32 1.5, %v508
        %v510 = vmul.f32 %v505, %v509
        %vm511 = vweird.f32 %v504
        %vm512 = vweird.f32 %v505
        %vm513 = vmor %vm511, %vm512
        %v514 = vsel %vm513, %v505, %v510
        %v515 = vmul.f32 %v492, %v514
        %v516 = vmul.f32 %v493, %v514
        %517 = vxpose.xlu0.b32.start [1/16] %v515, 128
        %518 = vxpose.xlu0.b32.cont [2/16] %v516, 128
        %519 = vxpose.xlu0.b32.cont [3/16] 0.0, 128
        %520 = vxpose.xlu0.b32.cont [4/16] 0.0, 128
        %521 = vxpose.xlu0.b32.cont [5/16] 0.0, 128
        %522 = vxpose.xlu0.b32.cont [6/16] 0.0, 128
        %523 = vxpose.xlu0.b32.cont [7/16] 0.0, 128
        %524 = vxpose.xlu0.b32.cont [8/16] 0.0, 128
        %525 = vxpose.xlu0.b32.cont [9/16] 0.0, 128
        %526 = vxpose.xlu0.b32.cont [10/16] 0.0, 128
        %527 = vxpose.xlu0.b32.cont [11/16] 0.0, 128
        %528 = vxpose.xlu0.b32.cont [12/16] 0.0, 128
        %529 = vxpose.xlu0.b32.cont [13/16] 0.0, 128
        %530 = vxpose.xlu0.b32.cont [14/16] 0.0, 128
        %531 = vxpose.xlu0.b32.cont [15/16] 0.0, 128
        %532 = vxpose.xlu0.b32.end [16/16] 0.0, 128
        %v533 = vpop.trf.xlu0
        %v534 = vpop.trf.xlu0
        %v535 = vpop.trf.xlu0
        %v536 = vpop.trf.xlu0
        %v537 = vpop.trf.xlu0
        %v538 = vpop.trf.xlu0
        %v539 = vpop.trf.xlu0
        %v540 = vpop.trf.xlu0
        %v541 = vpop.trf.xlu0
        %v542 = vpop.trf.xlu0
        %v543 = vpop.trf.xlu0
        %v544 = vpop.trf.xlu0
        %v545 = vpop.trf.xlu0
        %v546 = vpop.trf.xlu0
        %v547 = vpop.trf.xlu0
        %v548 = vpop.trf.xlu0
        %vm549 = vcmask 130048
        %v551 = vsel %vm549, %v533, 0
        %553 = vmatpush.msra.mxu0 0.0
        %554 = vmatpush.msra.mxu0 0.0
        %555 = vmatpush.msra.mxu0 0.0
        %556 = vmatpush.msra.mxu0 0.0
        %557 = vmatpush.msra.mxu0 0.0
        %558 = vmatpush.msra.mxu0 0.0
        %559 = vmatpush.msra.mxu0 0.0
        %560 = vmatpush.msra.mxu0 0.0
        %561 = vmatpush.msra.mxu0 0.0
        %562 = vmatpush.msra.mxu0 0.0
        %563 = vmatpush.msra.mxu0 0.0
        %564 = vmatpush.msra.mxu0 0.0
        %565 = vmatpush.msra.mxu0 0.0
        %566 = vmatpush.msra.mxu0 0.0
        %567 = vmatpush.msra.mxu0 %v516
        %568 = vmatpush.msra.mxu0 %v515
        %569 = vmatmul.f32.gmra.mxu0 %v551
        %v570 = vpop.f32.mrf.mxu0
        %v571 = vadd.f32 0.0, %v570
        %572 = vdwg.mxu0
        %v573 = vmax.f32 %v571, -1.0
        %v574 = vmin.f32 %v573, 1.0
        %vm575 = vweird.f32 %v574
        %vm576 = vmxor %vm575, 1
        %v577 = vsel %vm576, %v574, 0.0
        %v578 = vld [vmem:[%s1] sm:$0xff]
        %v579 = vld [vmem:[%s2] sm:$0x1]
        %v581 = vperm.slane %v579, 0
        %v584 = vsel %vm437, %v577, 0
        %586 = vmatpush.msra.mxu0 0.0
        %587 = vmatpush.msra.mxu0 0.0
        %588 = vmatpush.msra.mxu0 0.0
        %589 = vmatpush.msra.mxu0 0.0
        %590 = vmatpush.msra.mxu0 0.0
        %591 = vmatpush.msra.mxu0 0.0
        %592 = vmatpush.msra.mxu0 0.0
        %593 = vmatpush.msra.mxu0 0.0
        %594 = vmatpush.msra.mxu0 0.0
        %595 = vmatpush.msra.mxu0 0.0
        %596 = vmatpush.msra.mxu0 0.0
        %597 = vmatpush.msra.mxu0 0.0
        %598 = vmatpush.msra.mxu0 0.0
        %599 = vmatpush.msra.mxu0 0.0
        %600 = vmatpush.msra.mxu0 0.0
        %601 = vmatpush.msra.mxu0 %v578
        %602 = vmatmul.f32.gmra.mxu0 %v584
        %v603 = vpop.f32.mrf.mxu0
        %v604 = vadd.f32 %v581, %v603
        %605 = vdwg.mxu0
        %v606 = vld [vmem:[%s8] sm:$0x7f]
        %v607 = vld [vmem:[%s3] sm:$0xff]
        %v608 = vld [vmem:[%s3 + $0x8] sm:$0xff]
        %v609 = vld [vmem:[%s3 + $0x10] sm:$0xff]
        %v610 = vld [vmem:[%s3 + $0x18] sm:$0xff]
        %v611 = vld [vmem:[%s4] sm:$0x1]
        %v613 = vperm.slane %v611, 0
        %vm615 = vcmask 261120
        %v617 = vsel %vm615, %v604, 0
        %619 = vmatpush.msra.mxu0 0.0
        %620 = vmatpush.msra.mxu0 0.0
        %621 = vmatpush.msra.mxu0 0.0
        %622 = vmatpush.msra.mxu0 0.0
        %623 = vmatpush.msra.mxu0 0.0
        %624 = vmatpush.msra.mxu0 0.0
        %625 = vmatpush.msra.mxu0 0.0
        %626 = vmatpush.msra.mxu0 0.0
        %627 = vmatpush.msra.mxu0 0.0
        %628 = vmatpush.msra.mxu0 0.0
        %629 = vmatpush.msra.mxu0 0.0
        %630 = vmatpush.msra.mxu0 0.0
        %631 = vmatpush.msra.mxu0 %v610
        %632 = vmatpush.msra.mxu0 %v609
        %633 = vmatpush.msra.mxu0 %v608
        %634 = vmatpush.msra.mxu0 %v607
        %635 = vmatmul.f32.gmra.mxu0 %v617
        %v636 = vpop.f32.mrf.mxu0
        %v637 = vadd.f32 %v613, %v636
        %638 = vdwg.mxu0
        %v639 = vmul.f32 %v637, 0.35355338
        %641 = vrot.lane.b32.xlu0 %v637, 96
        %v642 = vpop.permute.xlu0 %641
        %v644 = vsel %vm437, %v639, 0
        %v646 = vsel %vm437, %v642, 0
        %648 = vmatpush.xpose.msra.mxu0 0.0
        %649 = vmatpush.xpose.msra.mxu0 0.0
        %650 = vmatpush.xpose.msra.mxu0 0.0
        %651 = vmatpush.xpose.msra.mxu0 0.0
        %652 = vmatpush.xpose.msra.mxu0 0.0
        %653 = vmatpush.xpose.msra.mxu0 0.0
        %654 = vmatpush.xpose.msra.mxu0 0.0
        %655 = vmatpush.xpose.msra.mxu0 0.0
        %656 = vmatpush.xpose.msra.mxu0 0.0
        %657 = vmatpush.xpose.msra.mxu0 0.0
        %658 = vmatpush.xpose.msra.mxu0 0.0
        %659 = vmatpush.xpose.msra.mxu0 0.0
        %660 = vmatpush.xpose.msra.mxu0 0.0
        %661 = vmatpush.xpose.msra.mxu0 0.0
        %662 = vmatpush.xpose.msra.mxu0 0.0
        %663 = vmatpush.xpose.msra.mxu0 %v646
        %664 = vmatmul.f32.gmra.mxu0 %v644
        %v665 = vpop.f32.mrf.mxu0
        %v666 = vadd.f32 0.0, %v665
        %667 = vdwg.mxu0
        %v668 = vsel %vm437, %v666, -inf
        %669 = vmax.xlane.f32.xlu0 %v668
        %v670 = vpop.xlane.xlu0 %669
        %v671 = vsub.f32 %v666, %v670
        %v672 = vmul.f32 %v671, 1.442695
        %v673 = vpow.pop %v672
        %v674 = vsel %vm437, %v673, 0.0
        %675 = vadd.xlane.f32.xlu0 %v674
        %v676 = vpop.xlane.xlu0 %675
        %v677 = vrcp.pop %v676
        %v678 = vmul.f32 %v676, %v677
        %v679 = vsub.f32 1.0, %v678
        %v680 = vmul.f32 %v677, %v679
        %v681 = vadd.f32 %v677, %v680
        %vm682 = vweird.f32 %v676
        %vm683 = vweird.f32 %v677
        %vm684 = vmor %vm682, %vm683
        %v685 = vsel %vm684, %v677, %v681
        %v686 = vand.u32 2147483647, %v676
        %vm687 = vcmp.eq.f32.partialorder %v686, 8.507059e+37
        %v688 = vand.u32 %v676, 2147483648
        %v689 = vor.u32 1.1754944e-38, %v688
        %v690 = vsel %vm687, %v689, %v685
        %v691 = vmul.f32 %v673, %v690
        %692 = vrot.lane.b32.xlu0 %v637, 64
        %v693 = vpop.permute.xlu0 %692
        %v696 = vsel %vm437, %v691, 0
        %698 = vmatpush.msra.mxu0 0.0
        %699 = vmatpush.msra.mxu0 0.0
        %700 = vmatpush.msra.mxu0 0.0
        %701 = vmatpush.msra.mxu0 0.0
        %702 = vmatpush.msra.mxu0 0.0
        %703 = vmatpush.msra.mxu0 0.0
        %704 = vmatpush.msra.mxu0 0.0
        %705 = vmatpush.msra.mxu0 0.0
        %706 = vmatpush.msra.mxu0 0.0
        %707 = vmatpush.msra.mxu0 0.0
        %708 = vmatpush.msra.mxu0 0.0
        %709 = vmatpush.msra.mxu0 0.0
        %710 = vmatpush.msra.mxu0 0.0
        %711 = vmatpush.msra.mxu0 0.0
        %712 = vmatpush.msra.mxu0 0.0
        %713 = vmatpush.msra.mxu0 %v693
        %714 = vmatmul.f32.gmra.mxu0 %v696
        %v715 = vpop.f32.mrf.mxu0
        %v716 = vadd.f32 0.0, %v715
        %717 = vdwg.mxu0
        %718 = vrot.lane.b32.xlu0 %v639, 120
        %v719 = vpop.permute.xlu0 %718
        %720 = vrot.lane.b32.xlu0 %v637, 88
        %v721 = vpop.permute.xlu0 %720
        %v722 = vsel %vm437, %v719, 0
        %v724 = vsel %vm437, %v721, 0
        %726 = vmatpush.xpose.msra.mxu0 0.0
        %727 = vmatpush.xpose.msra.mxu0 0.0
        %728 = vmatpush.xpose.msra.mxu0 0.0
        %729 = vmatpush.xpose.msra.mxu0 0.0
        %730 = vmatpush.xpose.msra.mxu0 0.0
        %731 = vmatpush.xpose.msra.mxu0 0.0
        %732 = vmatpush.xpose.msra.mxu0 0.0
        %733 = vmatpush.xpose.msra.mxu0 0.0
        %734 = vmatpush.xpose.msra.mxu0 0.0
        %735 = vmatpush.xpose.msra.mxu0 0.0
        %736 = vmatpush.xpose.msra.mxu0 0.0
        %737 = vmatpush.xpose.msra.mxu0 0.0
        %738 = vmatpush.xpose.msra.mxu0 0.0
        %739 = vmatpush.xpose.msra.mxu0 0.0
        %740 = vmatpush.xpose.msra.mxu0 0.0
        %741 = vmatpush.xpose.msra.mxu0 %v724
        %742 = vmatmul.f32.gmra.mxu0 %v722
        %v743 = vpop.f32.mrf.mxu0
        %v744 = vadd.f32 0.0, %v743
        %745 = vdwg.mxu0
        %v746 = vsel %vm437, %v744, -inf
        %747 = vmax.xlane.f32.xlu0 %v746
        %v748 = vpop.xlane.xlu0 %747
        %v749 = vsub.f32 %v744, %v748
        %v750 = vmul.f32 %v749, 1.442695
        %v751 = vpow.pop %v750
        %v752 = vsel %vm437, %v751, 0.0
        %753 = vadd.xlane.f32.xlu0 %v752
        %v754 = vpop.xlane.xlu0 %753
        %v755 = vrcp.pop %v754
        %v756 = vmul.f32 %v754, %v755
        %v757 = vsub.f32 1.0, %v756
        %v758 = vmul.f32 %v755, %v757
        %v759 = vadd.f32 %v755, %v758
        %vm760 = vweird.f32 %v754
        %vm761 = vweird.f32 %v755
        %vm762 = vmor %vm760, %vm761
        %v763 = vsel %vm762, %v755, %v759
        %v764 = vand.u32 2147483647, %v754
        %vm765 = vcmp.eq.f32.partialorder %v764, 8.507059e+37
        %v766 = vand.u32 %v754, 2147483648
        %v767 = vor.u32 1.1754944e-38, %v766
        %v768 = vsel %vm765, %v767, %v763
        %v769 = vmul.f32 %v751, %v768
        %770 = vrot.lane.b32.xlu0 %v637, 56
        %v771 = vpop.permute.xlu0 %770
        %v774 = vsel %vm437, %v769, 0
        %776 = vmatpush.msra.mxu0 0.0
        %777 = vmatpush.msra.mxu0 0.0
        %778 = vmatpush.msra.mxu0 0.0
        %779 = vmatpush.msra.mxu0 0.0
        %780 = vmatpush.msra.mxu0 0.0
        %781 = vmatpush.msra.mxu0 0.0
        %782 = vmatpush.msra.mxu0 0.0
        %783 = vmatpush.msra.mxu0 0.0
        %784 = vmatpush.msra.mxu0 0.0
        %785 = vmatpush.msra.mxu0 0.0
        %786 = vmatpush.msra.mxu0 0.0
        %787 = vmatpush.msra.mxu0 0.0
        %788 = vmatpush.msra.mxu0 0.0
        %789 = vmatpush.msra.mxu0 0.0
        %790 = vmatpush.msra.mxu0 0.0
        %791 = vmatpush.msra.mxu0 %v771
        %792 = vmatmul.f32.gmra.mxu0 %v774
        %v793 = vpop.f32.mrf.mxu0
        %v794 = vadd.f32 0.0, %v793
        %795 = vdwg.mxu0
        %796 = vrot.lane.b32.xlu0 %v639, 112
        %v797 = vpop.permute.xlu0 %796
        %798 = vrot.lane.b32.xlu0 %v637, 80
        %v799 = vpop.permute.xlu0 %798
        %v800 = vsel %vm437, %v797, 0
        %v802 = vsel %vm437, %v799, 0
        %804 = vmatpush.xpose.msra.mxu0 0.0
        %805 = vmatpush.xpose.msra.mxu0 0.0
        %806 = vmatpush.xpose.msra.mxu0 0.0
        %807 = vmatpush.xpose.msra.mxu0 0.0
        %808 = vmatpush.xpose.msra.mxu0 0.0
        %809 = vmatpush.xpose.msra.mxu0 0.0
        %810 = vmatpush.xpose.msra.mxu0 0.0
        %811 = vmatpush.xpose.msra.mxu0 0.0
        %812 = vmatpush.xpose.msra.mxu0 0.0
        %813 = vmatpush.xpose.msra.mxu0 0.0
        %814 = vmatpush.xpose.msra.mxu0 0.0
        %815 = vmatpush.xpose.msra.mxu0 0.0
        %816 = vmatpush.xpose.msra.mxu0 0.0
        %817 = vmatpush.xpose.msra.mxu0 0.0
        %818 = vmatpush.xpose.msra.mxu0 0.0
        %819 = vmatpush.xpose.msra.mxu0 %v802
        %820 = vmatmul.f32.gmra.mxu0 %v800
        %v821 = vpop.f32.mrf.mxu0
        %v822 = vadd.f32 0.0, %v821
        %823 = vdwg.mxu0
        %v824 = vsel %vm437, %v822, -inf
        %825 = vmax.xlane.f32.xlu0 %v824
        %v826 = vpop.xlane.xlu0 %825
        %v827 = vsub.f32 %v822, %v826
        %v828 = vmul.f32 %v827, 1.442695
        %v829 = vpow.pop %v828
        %v830 = vsel %vm437, %v829, 0.0
        %831 = vadd.xlane.f32.xlu0 %v830
        %v832 = vpop.xlane.xlu0 %831
        %v833 = vrcp.pop %v832
        %v834 = vmul.f32 %v832, %v833
        %v835 = vsub.f32 1.0, %v834
        %v836 = vmul.f32 %v833, %v835
        %v837 = vadd.f32 %v833, %v836
        %vm838 = vweird.f32 %v832
        %vm839 = vweird.f32 %v833
        %vm840 = vmor %vm838, %vm839
        %v841 = vsel %vm840, %v833, %v837
        %v842 = vand.u32 2147483647, %v832
        %vm843 = vcmp.eq.f32.partialorder %v842, 8.507059e+37
        %v844 = vand.u32 %v832, 2147483648
        %v845 = vor.u32 1.1754944e-38, %v844
        %v846 = vsel %vm843, %v845, %v841
        %v847 = vmul.f32 %v829, %v846
        %848 = vrot.lane.b32.xlu0 %v637, 48
        %v849 = vpop.permute.xlu0 %848
        %v852 = vsel %vm437, %v847, 0
        %854 = vmatpush.msra.mxu0 0.0
        %855 = vmatpush.msra.mxu0 0.0
        %856 = vmatpush.msra.mxu0 0.0
        %857 = vmatpush.msra.mxu0 0.0
        %858 = vmatpush.msra.mxu0 0.0
        %859 = vmatpush.msra.mxu0 0.0
        %860 = vmatpush.msra.mxu0 0.0
        %861 = vmatpush.msra.mxu0 0.0
        %862 = vmatpush.msra.mxu0 0.0
        %863 = vmatpush.msra.mxu0 0.0
        %864 = vmatpush.msra.mxu0 0.0
        %865 = vmatpush.msra.mxu0 0.0
        %866 = vmatpush.msra.mxu0 0.0
        %867 = vmatpush.msra.mxu0 0.0
        %868 = vmatpush.msra.mxu0 0.0
        %869 = vmatpush.msra.mxu0 %v849
        %870 = vmatmul.f32.gmra.mxu0 %v852
        %v871 = vpop.f32.mrf.mxu0
        %v872 = vadd.f32 0.0, %v871
        %873 = vdwg.mxu0
        %874 = vrot.lane.b32.xlu0 %v639, 104
        %v875 = vpop.permute.xlu0 %874
        %876 = vrot.lane.b32.xlu0 %v637, 72
        %v877 = vpop.permute.xlu0 %876
        %v878 = vsel %vm437, %v875, 0
        %v880 = vsel %vm437, %v877, 0
        %882 = vmatpush.xpose.msra.mxu0 0.0
        %883 = vmatpush.xpose.msra.mxu0 0.0
        %884 = vmatpush.xpose.msra.mxu0 0.0
        %885 = vmatpush.xpose.msra.mxu0 0.0
        %886 = vmatpush.xpose.msra.mxu0 0.0
        %887 = vmatpush.xpose.msra.mxu0 0.0
        %888 = vmatpush.xpose.msra.mxu0 0.0
        %889 = vmatpush.xpose.msra.mxu0 0.0
        %890 = vmatpush.xpose.msra.mxu0 0.0
        %891 = vmatpush.xpose.msra.mxu0 0.0
        %892 = vmatpush.xpose.msra.mxu0 0.0
        %893 = vmatpush.xpose.msra.mxu0 0.0
        %894 = vmatpush.xpose.msra.mxu0 0.0
        %895 = vmatpush.xpose.msra.mxu0 0.0
        %896 = vmatpush.xpose.msra.mxu0 0.0
        %897 = vmatpush.xpose.msra.mxu0 %v880
        %898 = vmatmul.f32.gmra.mxu0 %v878
        %v899 = vpop.f32.mrf.mxu0
        %v900 = vadd.f32 0.0, %v899
        %901 = vdwg.mxu0
        %v902 = vsel %vm437, %v900, -inf
        %903 = vmax.xlane.f32.xlu0 %v902
        %v904 = vpop.xlane.xlu0 %903
        %v905 = vsub.f32 %v900, %v904
        %v906 = vmul.f32 %v905, 1.442695
        %v907 = vpow.pop %v906
        %v908 = vsel %vm437, %v907, 0.0
        %909 = vadd.xlane.f32.xlu0 %v908
        %v910 = vpop.xlane.xlu0 %909
        %v911 = vrcp.pop %v910
        %v912 = vmul.f32 %v910, %v911
        %v913 = vsub.f32 1.0, %v912
        %v914 = vmul.f32 %v911, %v913
        %v915 = vadd.f32 %v911, %v914
        %vm916 = vweird.f32 %v910
        %vm917 = vweird.f32 %v911
        %vm918 = vmor %vm916, %vm917
        %v919 = vsel %vm918, %v911, %v915
        %v920 = vand.u32 2147483647, %v910
        %vm921 = vcmp.eq.f32.partialorder %v920, 8.507059e+37
        %v922 = vand.u32 %v910, 2147483648
        %v923 = vor.u32 1.1754944e-38, %v922
        %v924 = vsel %vm921, %v923, %v919
        %v925 = vmul.f32 %v907, %v924
        %926 = vrot.lane.b32.xlu0 %v637, 40
        %v927 = vpop.permute.xlu0 %926
        %v930 = vsel %vm437, %v925, 0
        %932 = vmatpush.msra.mxu0 0.0
        %933 = vmatpush.msra.mxu0 0.0
        %934 = vmatpush.msra.mxu0 0.0
        %935 = vmatpush.msra.mxu0 0.0
        %936 = vmatpush.msra.mxu0 0.0
        %937 = vmatpush.msra.mxu0 0.0
        %938 = vmatpush.msra.mxu0 0.0
        %939 = vmatpush.msra.mxu0 0.0
        %940 = vmatpush.msra.mxu0 0.0
        %941 = vmatpush.msra.mxu0 0.0
        %942 = vmatpush.msra.mxu0 0.0
        %943 = vmatpush.msra.mxu0 0.0
        %944 = vmatpush.msra.mxu0 0.0
        %945 = vmatpush.msra.mxu0 0.0
        %946 = vmatpush.msra.mxu0 0.0
        %947 = vmatpush.msra.mxu0 %v927
        %948 = vmatmul.f32.gmra.mxu0 %v930
        %v949 = vpop.f32.mrf.mxu0
        %v950 = vadd.f32 0.0, %v949
        %951 = vdwg.mxu0
        %953 = vrot.lane.b32.xlu0 %v794, 8
        %v954 = vpop.permute.xlu0 %953
        %957 = vrot.lane.b32.xlu0 %v872, 16
        %v958 = vpop.permute.xlu0 %957
        %961 = vrot.lane.b32.xlu0 %v950, 24
        %v962 = vpop.permute.xlu0 %961
        %v964 = vsel %vm437, %v716, %v954
        %v965 = vsel %vm549, %v964, %v958
        %vm966 = vcmask 195584
        %v967 = vsel %vm966, %v965, %v962
        %v968 = vld [vmem:[#allocation3] sm:$0xff]
        %v969 = vld [vmem:[#allocation3 + $0x8] sm:$0xff]
        %v970 = vld [vmem:[#allocation3 + $0x10] sm:$0xff]
        %v971 = vld [vmem:[#allocation3 + $0x18] sm:$0xff]
        %v972 = vperm.slane %v606, 0
        %v974 = vsel %vm615, %v967, 0
        %976 = vmatpush.msra.mxu0 0.0
        %977 = vmatpush.msra.mxu0 0.0
        %978 = vmatpush.msra.mxu0 0.0
        %979 = vmatpush.msra.mxu0 0.0
        %980 = vmatpush.msra.mxu0 0.0
        %981 = vmatpush.msra.mxu0 0.0
        %982 = vmatpush.msra.mxu0 0.0
        %983 = vmatpush.msra.mxu0 0.0
        %984 = vmatpush.msra.mxu0 0.0
        %985 = vmatpush.msra.mxu0 0.0
        %986 = vmatpush.msra.mxu0 0.0
        %987 = vmatpush.msra.mxu0 0.0
        %988 = vmatpush.msra.mxu0 %v971
        %989 = vmatpush.msra.mxu0 %v970
        %990 = vmatpush.msra.mxu0 %v969
        %991 = vmatpush.msra.mxu0 %v968
        %992 = vmatmul.f32.gmra.mxu0 %v974
        %v993 = vpop.f32.mrf.mxu0
        %v994 = vadd.f32 %v972, %v993
        %995 = vdwg.mxu0
        %v996 = vadd.f32 %v604, %v994
        %v997 = vsel %vm615, %v996, 0.0
        %998 = vadd.xlane.f32.xlu0 %v997
        %v999 = vpop.xlane.xlu0 %998
        %v1000 = vrcp.pop 32.0
        %v1001 = vmul.f32 32.0, %v1000
        %v1002 = vsub.f32 1.0, %v1001
        %v1003 = vmul.f32 %v1000, %v1002
        %v1004 = vadd.f32 %v1000, %v1003
        %vm1005 = vweird.f32 %v1000
        %v1006 = vsel %vm1005, %v1000, %v1004
        %v1007 = vmul.f32 %v999, %v1006
        %v1008 = vsub.f32 %v996, %v1007
        %v1009 = vmul.f32 %v1008, %v1008
        %v1010 = vsel %vm615, %v1009, 0.0
        %1011 = vadd.xlane.f32.xlu0 %v1010
        %v1012 = vpop.xlane.xlu0 %1011
        %v1013 = vmul.f32 %v1012, %v1006
        %v1014 = vadd.f32 %v1013, 1e-05
        %v1015 = vrsqrt.pop %v1014
        %v1016 = vmul.f32 %v1015, %v1014
        %v1017 = vmul.f32 %v1016, %v1015
        %v1018 = vmul.f32 0.5, %v1017
        %v1019 = vsub.f32 1.5, %v1018
        %v1020 = vmul.f32 %v1015, %v1019
        %vm1021 = vweird.f32 %v1014
        %vm1022 = vweird.f32 %v1015
        %vm1023 = vmor %vm1021, %vm1022
        %v1024 = vsel %vm1023, %v1015, %v1020
        %v1025 = vmul.f32 %v1008, %v1024
        %v1026 = vperm.slane %v606, 1
        %v1027 = vmul.f32 %v1025, %v1026
        %v1028 = vperm.slane %v606, 2
        %v1029 = vadd.f32 %v1027, %v1028
        %v1030 = vld [vmem:[#allocation5] sm:$0xff]
        %v1031 = vld [vmem:[#allocation5 + $0x8] sm:$0xff]
        %v1032 = vld [vmem:[#allocation5 + $0x10] sm:$0xff]
        %v1033 = vld [vmem:[#allocation5 + $0x18] sm:$0xff]
        %v1034 = vperm.slane %v606, 3
        %v1036 = vsel %vm615, %v1029, 0
        %1038 = vmatpush.msra.mxu0 0.0
        %1039 = vmatpush.msra.mxu0 0.0
        %1040 = vmatpush.msra.mxu0 0.0
        %1041 = vmatpush.msra.mxu0 0.0
        %1042 = vmatpush.msra.mxu0 0.0
        %1043 = vmatpush.msra.mxu0 0.0
        %1044 = vmatpush.msra.mxu0 0.0
        %1045 = vmatpush.msra.mxu0 0.0
        %1046 = vmatpush.msra.mxu0 0.0
        %1047 = vmatpush.msra.mxu0 0.0
        %1048 = vmatpush.msra.mxu0 0.0
        %1049 = vmatpush.msra.mxu0 0.0
        %1050 = vmatpush.msra.mxu0 %v1033
        %1051 = vmatpush.msra.mxu0 %v1032
        %1052 = vmatpush.msra.mxu0 %v1031
        %1053 = vmatpush.msra.mxu0 %v1030
        %1054 = vmatmul.f32.gmra.mxu0 %v1036
        %v1055 = vpop.f32.mrf.mxu0
        %v1056 = vadd.f32 %v1034, %v1055
        %1057 = vdwg.mxu0
        %v1058 = vmax.f32 %v1056, 0.0
        %v1059 = vld [vmem:[#allocation7] sm:$0xff]
        %v1060 = vld [vmem:[#allocation7 + $0x8] sm:$0xff]
        %v1061 = vld [vmem:[#allocation7 + $0x10] sm:$0xff]
        %v1062 = vld [vmem:[#allocation7 + $0x18] sm:$0xff]
        %v1063 = vperm.slane %v606, 4
        %v1065 = vsel %vm615, %v1058, 0
        %1067 = vmatpush.msra.mxu0 0.0
        %1068 = vmatpush.msra.mxu0 0.0
        %1069 = vmatpush.msra.mxu0 0.0
        %1070 = vmatpush.msra.mxu0 0.0
        %1071 = vmatpush.msra.mxu0 0.0
        %1072 = vmatpush.msra.mxu0 0.0
        %1073 = vmatpush.msra.mxu0 0.0
        %1074 = vmatpush.msra.mxu0 0.0
        %1075 = vmatpush.msra.mxu0 0.0
        %1076 = vmatpush.msra.mxu0 0.0
        %1077 = vmatpush.msra.mxu0 0.0
        %1078 = vmatpush.msra.mxu0 0.0
        %1079 = vmatpush.msra.mxu0 %v1062
        %1080 = vmatpush.msra.mxu0 %v1061
        %1081 = vmatpush.msra.mxu0 %v1060
        %1082 = vmatpush.msra.mxu0 %v1059
        %1083 = vmatmul.f32.gmra.mxu0 %v1065
        %v1084 = vpop.f32.mrf.mxu0
        %v1085 = vadd.f32 %v1063, %v1084
        %1086 = vdwg.mxu0
        %v1087 = vadd.f32 %v1029, %v1085
        %v1088 = vsel %vm615, %v1087, 0.0
        %1089 = vadd.xlane.f32.xlu0 %v1088
        %v1090 = vpop.xlane.xlu0 %1089
        %v1091 = vmul.f32 %v1090, %v1006
        %v1092 = vsub.f32 %v1087, %v1091
        %v1093 = vmul.f32 %v1092, %v1092
        %v1094 = vsel %vm615, %v1093, 0.0
        %1095 = vadd.xlane.f32.xlu0 %v1094
        %v1096 = vpop.xlane.xlu0 %1095
        %v1097 = vmul.f32 %v1096, %v1006
        %v1098 = vadd.f32 %v1097, 1e-05
        %v1099 = vrsqrt.pop %v1098
        %v1100 = vmul.f32 %v1099, %v1098
        %v1101 = vmul.f32 %v1100, %v1099
        %v1102 = vmul.f32 0.5, %v1101
        %v1103 = vsub.f32 1.5, %v1102
        %v1104 = vmul.f32 %v1099, %v1103
        %vm1105 = vweird.f32 %v1098
        %vm1106 = vweird.f32 %v1099
        %vm1107 = vmor %vm1105, %vm1106
        %v1108 = vsel %vm1107, %v1099, %v1104
        %v1109 = vmul.f32 %v1092, %v1108
        %v1110 = vperm.slane %v606, 5
        %v1111 = vmul.f32 %v1109, %v1110
        %v1112 = vperm.slane %v606, 6
        %v1113 = vadd.f32 %v1111, %v1112
        %s1114 = scalar_lea.vmem %s8, 8
        %v1115 = vld [vmem:[%s1114] sm:$0x7f]
        %s1116 = scalar_lea.vmem %s3, 32
        %v1117 = vld [vmem:[%s1116] sm:$0xff]
        %v1118 = vld [vmem:[%s1116 + $0x8] sm:$0xff]
        %v1119 = vld [vmem:[%s1116 + $0x10] sm:$0xff]
        %v1120 = vld [vmem:[%s1116 + $0x18] sm:$0xff]
        %s1121 = scalar_lea.vmem %s4, 1
        %v1122 = vld [vmem:[%s1121] sm:$0x1]
        %v1124 = vperm.slane %v1122, 0
        %v1127 = vsel %vm615, %v1113, 0
        %1129 = vmatpush.msra.mxu0 0.0
        %1130 = vmatpush.msra.mxu0 0.0
        %1131 = vmatpush.msra.mxu0 0.0
        %1132 = vmatpush.msra.mxu0 0.0
        %1133 = vmatpush.msra.mxu0 0.0
        %1134 = vmatpush.msra.mxu0 0.0
        %1135 = vmatpush.msra.mxu0 0.0
        %1136 = vmatpush.msra.mxu0 0.0
        %1137 = vmatpush.msra.mxu0 0.0
        %1138 = vmatpush.msra.mxu0 0.0
        %1139 = vmatpush.msra.mxu0 0.0
        %1140 = vmatpush.msra.mxu0 0.0
        %1141 = vmatpush.msra.mxu0 %v1120
        %1142 = vmatpush.msra.mxu0 %v1119
        %1143 = vmatpush.msra.mxu0 %v1118
        %1144 = vmatpush.msra.mxu0 %v1117
        %1145 = vmatmul.f32.gmra.mxu0 %v1127
        %v1146 = vpop.f32.mrf.mxu0
        %v1147 = vadd.f32 %v1124, %v1146
        %1148 = vdwg.mxu0
        %v1149 = vmul.f32 %v1147, 0.35355338
        %1151 = vrot.lane.b32.xlu0 %v1147, 96
        %v1152 = vpop.permute.xlu0 %1151
        %v1154 = vsel %vm437, %v1149, 0
        %v1156 = vsel %vm437, %v1152, 0
        %1158 = vmatpush.xpose.msra.mxu0 0.0
        %1159 = vmatpush.xpose.msra.mxu0 0.0
        %1160 = vmatpush.xpose.msra.mxu0 0.0
        %1161 = vmatpush.xpose.msra.mxu0 0.0
        %1162 = vmatpush.xpose.msra.mxu0 0.0
        %1163 = vmatpush.xpose.msra.mxu0 0.0
        %1164 = vmatpush.xpose.msra.mxu0 0.0
        %1165 = vmatpush.xpose.msra.mxu0 0.0
        %1166 = vmatpush.xpose.msra.mxu0 0.0
        %1167 = vmatpush.xpose.msra.mxu0 0.0
        %1168 = vmatpush.xpose.msra.mxu0 0.0
        %1169 = vmatpush.xpose.msra.mxu0 0.0
        %1170 = vmatpush.xpose.msra.mxu0 0.0
        %1171 = vmatpush.xpose.msra.mxu0 0.0
        %1172 = vmatpush.xpose.msra.mxu0 0.0
        %1173 = vmatpush.xpose.msra.mxu0 %v1156
        %1174 = vmatmul.f32.gmra.mxu0 %v1154
        %v1175 = vpop.f32.mrf.mxu0
        %v1176 = vadd.f32 0.0, %v1175
        %1177 = vdwg.mxu0
        %v1178 = vsel %vm437, %v1176, -inf
        %1179 = vmax.xlane.f32.xlu0 %v1178
        %v1180 = vpop.xlane.xlu0 %1179
        %v1181 = vsub.f32 %v1176, %v1180
        %v1182 = vmul.f32 %v1181, 1.442695
        %v1183 = vpow.pop %v1182
        %v1184 = vsel %vm437, %v1183, 0.0
        %1185 = vadd.xlane.f32.xlu0 %v1184
        %v1186 = vpop.xlane.xlu0 %1185
        %v1187 = vrcp.pop %v1186
        %v1188 = vmul.f32 %v1186, %v1187
        %v1189 = vsub.f32 1.0, %v1188
        %v1190 = vmul.f32 %v1187, %v1189
        %v1191 = vadd.f32 %v1187, %v1190
        %vm1192 = vweird.f32 %v1186
        %vm1193 = vweird.f32 %v1187
        %vm1194 = vmor %vm1192, %vm1193
        %v1195 = vsel %vm1194, %v1187, %v1191
        %v1196 = vand.u32 2147483647, %v1186
        %vm1197 = vcmp.eq.f32.partialorder %v1196, 8.507059e+37
        %v1198 = vand.u32 %v1186, 2147483648
        %v1199 = vor.u32 1.1754944e-38, %v1198
        %v1200 = vsel %vm1197, %v1199, %v1195
        %v1201 = vmul.f32 %v1183, %v1200
        %1202 = vrot.lane.b32.xlu0 %v1147, 64
        %v1203 = vpop.permute.xlu0 %1202
        %v1206 = vsel %vm437, %v1201, 0
        %1208 = vmatpush.msra.mxu0 0.0
        %1209 = vmatpush.msra.mxu0 0.0
        %1210 = vmatpush.msra.mxu0 0.0
        %1211 = vmatpush.msra.mxu0 0.0
        %1212 = vmatpush.msra.mxu0 0.0
        %1213 = vmatpush.msra.mxu0 0.0
        %1214 = vmatpush.msra.mxu0 0.0
        %1215 = vmatpush.msra.mxu0 0.0
        %1216 = vmatpush.msra.mxu0 0.0
        %1217 = vmatpush.msra.mxu0 0.0
        %1218 = vmatpush.msra.mxu0 0.0
        %1219 = vmatpush.msra.mxu0 0.0
        %1220 = vmatpush.msra.mxu0 0.0
        %1221 = vmatpush.msra.mxu0 0.0
        %1222 = vmatpush.msra.mxu0 0.0
        %1223 = vmatpush.msra.mxu0 %v1203
        %1224 = vmatmul.f32.gmra.mxu0 %v1206
        %v1225 = vpop.f32.mrf.mxu0
        %v1226 = vadd.f32 0.0, %v1225
        %1227 = vdwg.mxu0
        %1228 = vrot.lane.b32.xlu0 %v1149, 120
        %v1229 = vpop.permute.xlu0 %1228
        %1230 = vrot.lane.b32.xlu0 %v1147, 88
        %v1231 = vpop.permute.xlu0 %1230
        %v1232 = vsel %vm437, %v1229, 0
        %v1234 = vsel %vm437, %v1231, 0
        %1236 = vmatpush.xpose.msra.mxu0 0.0
        %1237 = vmatpush.xpose.msra.mxu0 0.0
        %1238 = vmatpush.xpose.msra.mxu0 0.0
        %1239 = vmatpush.xpose.msra.mxu0 0.0
        %1240 = vmatpush.xpose.msra.mxu0 0.0
        %1241 = vmatpush.xpose.msra.mxu0 0.0
        %1242 = vmatpush.xpose.msra.mxu0 0.0
        %1243 = vmatpush.xpose.msra.mxu0 0.0
        %1244 = vmatpush.xpose.msra.mxu0 0.0
        %1245 = vmatpush.xpose.msra.mxu0 0.0
        %1246 = vmatpush.xpose.msra.mxu0 0.0
        %1247 = vmatpush.xpose.msra.mxu0 0.0
        %1248 = vmatpush.xpose.msra.mxu0 0.0
        %1249 = vmatpush.xpose.msra.mxu0 0.0
        %1250 = vmatpush.xpose.msra.mxu0 0.0
        %1251 = vmatpush.xpose.msra.mxu0 %v1234
        %1252 = vmatmul.f32.gmra.mxu0 %v1232
        %v1253 = vpop.f32.mrf.mxu0
        %v1254 = vadd.f32 0.0, %v1253
        %1255 = vdwg.mxu0
        %v1256 = vsel %vm437, %v1254, -inf
        %1257 = vmax.xlane.f32.xlu0 %v1256
        %v1258 = vpop.xlane.xlu0 %1257
        %v1259 = vsub.f32 %v1254, %v1258
        %v1260 = vmul.f32 %v1259, 1.442695
        %v1261 = vpow.pop %v1260
        %v1262 = vsel %vm437, %v1261, 0.0
        %1263 = vadd.xlane.f32.xlu0 %v1262
        %v1264 = vpop.xlane.xlu0 %1263
        %v1265 = vrcp.pop %v1264
        %v1266 = vmul.f32 %v1264, %v1265
        %v1267 = vsub.f32 1.0, %v1266
        %v1268 = vmul.f32 %v1265, %v1267
        %v1269 = vadd.f32 %v1265, %v1268
        %vm1270 = vweird.f32 %v1264
        %vm1271 = vweird.f32 %v1265
        %vm1272 = vmor %vm1270, %vm1271
        %v1273 = vsel %vm1272, %v1265, %v1269
        %v1274 = vand.u32 2147483647, %v1264
        %vm1275 = vcmp.eq.f32.partialorder %v1274, 8.507059e+37
        %v1276 = vand.u32 %v1264, 2147483648
        %v1277 = vor.u32 1.1754944e-38, %v1276
        %v1278 = vsel %vm1275, %v1277, %v1273
        %v1279 = vmul.f32 %v1261, %v1278
        %1280 = vrot.lane.b32.xlu0 %v1147, 56
        %v1281 = vpop.permute.xlu0 %1280
        %v1284 = vsel %vm437, %v1279, 0
        %1286 = vmatpush.msra.mxu0 0.0
        %1287 = vmatpush.msra.mxu0 0.0
        %1288 = vmatpush.msra.mxu0 0.0
        %1289 = vmatpush.msra.mxu0 0.0
        %1290 = vmatpush.msra.mxu0 0.0
        %1291 = vmatpush.msra.mxu0 0.0
        %1292 = vmatpush.msra.mxu0 0.0
        %1293 = vmatpush.msra.mxu0 0.0
        %1294 = vmatpush.msra.mxu0 0.0
        %1295 = vmatpush.msra.mxu0 0.0
        %1296 = vmatpush.msra.mxu0 0.0
        %1297 = vmatpush.msra.mxu0 0.0
        %1298 = vmatpush.msra.mxu0 0.0
        %1299 = vmatpush.msra.mxu0 0.0
        %1300 = vmatpush.msra.mxu0 0.0
        %1301 = vmatpush.msra.mxu0 %v1281
        %1302 = vmatmul.f32.gmra.mxu0 %v1284
        %v1303 = vpop.f32.mrf.mxu0
        %v1304 = vadd.f32 0.0, %v1303
        %1305 = vdwg.mxu0
        %1306 = vrot.lane.b32.xlu0 %v1149, 112
        %v1307 = vpop.permute.xlu0 %1306
        %1308 = vrot.lane.b32.xlu0 %v1147, 80
        %v1309 = vpop.permute.xlu0 %1308
        %v1310 = vsel %vm437, %v1307, 0
        %v1312 = vsel %vm437, %v1309, 0
        %1314 = vmatpush.xpose.msra.mxu0 0.0
        %1315 = vmatpush.xpose.msra.mxu0 0.0
        %1316 = vmatpush.xpose.msra.mxu0 0.0
        %1317 = vmatpush.xpose.msra.mxu0 0.0
        %1318 = vmatpush.xpose.msra.mxu0 0.0
        %1319 = vmatpush.xpose.msra.mxu0 0.0
        %1320 = vmatpush.xpose.msra.mxu0 0.0
        %1321 = vmatpush.xpose.msra.mxu0 0.0
        %1322 = vmatpush.xpose.msra.mxu0 0.0
        %1323 = vmatpush.xpose.msra.mxu0 0.0
        %1324 = vmatpush.xpose.msra.mxu0 0.0
        %1325 = vmatpush.xpose.msra.mxu0 0.0
        %1326 = vmatpush.xpose.msra.mxu0 0.0
        %1327 = vmatpush.xpose.msra.mxu0 0.0
        %1328 = vmatpush.xpose.msra.mxu0 0.0
        %1329 = vmatpush.xpose.msra.mxu0 %v1312
        %1330 = vmatmul.f32.gmra.mxu0 %v1310
        %v1331 = vpop.f32.mrf.mxu0
        %v1332 = vadd.f32 0.0, %v1331
        %1333 = vdwg.mxu0
        %v1334 = vsel %vm437, %v1332, -inf
        %1335 = vmax.xlane.f32.xlu0 %v1334
        %v1336 = vpop.xlane.xlu0 %1335
        %v1337 = vsub.f32 %v1332, %v1336
        %v1338 = vmul.f32 %v1337, 1.442695
        %v1339 = vpow.pop %v1338
        %v1340 = vsel %vm437, %v1339, 0.0
        %1341 = vadd.xlane.f32.xlu0 %v1340
        %v1342 = vpop.xlane.xlu0 %1341
        %v1343 = vrcp.pop %v1342
        %v1344 = vmul.f32 %v1342, %v1343
        %v1345 = vsub.f32 1.0, %v1344
        %v1346 = vmul.f32 %v1343, %v1345
        %v1347 = vadd.f32 %v1343, %v1346
        %vm1348 = vweird.f32 %v1342
        %vm1349 = vweird.f32 %v1343
        %vm1350 = vmor %vm1348, %vm1349
        %v1351 = vsel %vm1350, %v1343, %v1347
        %v1352 = vand.u32 2147483647, %v1342
        %vm1353 = vcmp.eq.f32.partialorder %v1352, 8.507059e+37
        %v1354 = vand.u32 %v1342, 2147483648
        %v1355 = vor.u32 1.1754944e-38, %v1354
        %v1356 = vsel %vm1353, %v1355, %v1351
        %v1357 = vmul.f32 %v1339, %v1356
        %1358 = vrot.lane.b32.xlu0 %v1147, 48
        %v1359 = vpop.permute.xlu0 %1358
        %v1362 = vsel %vm437, %v1357, 0
        %1364 = vmatpush.msra.mxu0 0.0
        %1365 = vmatpush.msra.mxu0 0.0
        %1366 = vmatpush.msra.mxu0 0.0
        %1367 = vmatpush.msra.mxu0 0.0
        %1368 = vmatpush.msra.mxu0 0.0
        %1369 = vmatpush.msra.mxu0 0.0
        %1370 = vmatpush.msra.mxu0 0.0
        %1371 = vmatpush.msra.mxu0 0.0
        %1372 = vmatpush.msra.mxu0 0.0
        %1373 = vmatpush.msra.mxu0 0.0
        %1374 = vmatpush.msra.mxu0 0.0
        %1375 = vmatpush.msra.mxu0 0.0
        %1376 = vmatpush.msra.mxu0 0.0
        %1377 = vmatpush.msra.mxu0 0.0
        %1378 = vmatpush.msra.mxu0 0.0
        %1379 = vmatpush.msra.mxu0 %v1359
        %1380 = vmatmul.f32.gmra.mxu0 %v1362
        %v1381 = vpop.f32.mrf.mxu0
        %v1382 = vadd.f32 0.0, %v1381
        %1383 = vdwg.mxu0
        %1384 = vrot.lane.b32.xlu0 %v1149, 104
        %v1385 = vpop.permute.xlu0 %1384
        %1386 = vrot.lane.b32.xlu0 %v1147, 72
        %v1387 = vpop.permute.xlu0 %1386
        %v1388 = vsel %vm437, %v1385, 0
        %v1390 = vsel %vm437, %v1387, 0
        %1392 = vmatpush.xpose.msra.mxu0 0.0
        %1393 = vmatpush.xpose.msra.mxu0 0.0
        %1394 = vmatpush.xpose.msra.mxu0 0.0
        %1395 = vmatpush.xpose.msra.mxu0 0.0
        %1396 = vmatpush.xpose.msra.mxu0 0.0
        %1397 = vmatpush.xpose.msra.mxu0 0.0
        %1398 = vmatpush.xpose.msra.mxu0 0.0
        %1399 = vmatpush.xpose.msra.mxu0 0.0
        %1400 = vmatpush.xpose.msra.mxu0 0.0
        %1401 = vmatpush.xpose.msra.mxu0 0.0
        %1402 = vmatpush.xpose.msra.mxu0 0.0
        %1403 = vmatpush.xpose.msra.mxu0 0.0
        %1404 = vmatpush.xpose.msra.mxu0 0.0
        %1405 = vmatpush.xpose.msra.mxu0 0.0
        %1406 = vmatpush.xpose.msra.mxu0 0.0
        %1407 = vmatpush.xpose.msra.mxu0 %v1390
        %1408 = vmatmul.f32.gmra.mxu0 %v1388
        %v1409 = vpop.f32.mrf.mxu0
        %v1410 = vadd.f32 0.0, %v1409
        %1411 = vdwg.mxu0
        %v1412 = vsel %vm437, %v1410, -inf
        %1413 = vmax.xlane.f32.xlu0 %v1412
        %v1414 = vpop.xlane.xlu0 %1413
        %v1415 = vsub.f32 %v1410, %v1414
        %v1416 = vmul.f32 %v1415, 1.442695
        %v1417 = vpow.pop %v1416
        %v1418 = vsel %vm437, %v1417, 0.0
        %1419 = vadd.xlane.f32.xlu0 %v1418
        %v1420 = vpop.xlane.xlu0 %1419
        %v1421 = vrcp.pop %v1420
        %v1422 = vmul.f32 %v1420, %v1421
        %v1423 = vsub.f32 1.0, %v1422
        %v1424 = vmul.f32 %v1421, %v1423
        %v1425 = vadd.f32 %v1421, %v1424
        %vm1426 = vweird.f32 %v1420
        %vm1427 = vweird.f32 %v1421
        %vm1428 = vmor %vm1426, %vm1427
        %v1429 = vsel %vm1428, %v1421, %v1425
        %v1430 = vand.u32 2147483647, %v1420
        %vm1431 = vcmp.eq.f32.partialorder %v1430, 8.507059e+37
        %v1432 = vand.u32 %v1420, 2147483648
        %v1433 = vor.u32 1.1754944e-38, %v1432
        %v1434 = vsel %vm1431, %v1433, %v1429
        %v1435 = vmul.f32 %v1417, %v1434
        %1436 = vrot.lane.b32.xlu0 %v1147, 40
        %v1437 = vpop.permute.xlu0 %1436
        %v1440 = vsel %vm437, %v1435, 0
        %1442 = vmatpush.msra.mxu0 0.0
        %1443 = vmatpush.msra.mxu0 0.0
        %1444 = vmatpush.msra.mxu0 0.0
        %1445 = vmatpush.msra.mxu0 0.0
        %1446 = vmatpush.msra.mxu0 0.0
        %1447 = vmatpush.msra.mxu0 0.0
        %1448 = vmatpush.msra.mxu0 0.0
        %1449 = vmatpush.msra.mxu0 0.0
        %1450 = vmatpush.msra.mxu0 0.0
        %1451 = vmatpush.msra.mxu0 0.0
        %1452 = vmatpush.msra.mxu0 0.0
        %1453 = vmatpush.msra.mxu0 0.0
        %1454 = vmatpush.msra.mxu0 0.0
        %1455 = vmatpush.msra.mxu0 0.0
        %1456 = vmatpush.msra.mxu0 0.0
        %1457 = vmatpush.msra.mxu0 %v1437
        %1458 = vmatmul.f32.gmra.mxu0 %v1440
        %v1459 = vpop.f32.mrf.mxu0
        %v1460 = vadd.f32 0.0, %v1459
        %1461 = vdwg.mxu0
        %1463 = vrot.lane.b32.xlu0 %v1304, 8
        %v1464 = vpop.permute.xlu0 %1463
        %1467 = vrot.lane.b32.xlu0 %v1382, 16
        %v1468 = vpop.permute.xlu0 %1467
        %1471 = vrot.lane.b32.xlu0 %v1460, 24
        %v1472 = vpop.permute.xlu0 %1471
        %v1474 = vsel %vm437, %v1226, %v1464
        %v1475 = vsel %vm549, %v1474, %v1468
        %v1476 = vsel %vm966, %v1475, %v1472
        %s1477 = scalar_lea.vmem [#allocation3], 32
        %v1478 = vld [vmem:[%s1477] sm:$0xff]
        %v1479 = vld [vmem:[%s1477 + $0x8] sm:$0xff]
        %v1480 = vld [vmem:[%s1477 + $0x10] sm:$0xff]
        %v1481 = vld [vmem:[%s1477 + $0x18] sm:$0xff]
        %v1482 = vperm.slane %v1115, 0
        %v1484 = vsel %vm615, %v1476, 0
        %1486 = vmatpush.msra.mxu0 0.0
        %1487 = vmatpush.msra.mxu0 0.0
        %1488 = vmatpush.msra.mxu0 0.0
        %1489 = vmatpush.msra.mxu0 0.0
        %1490 = vmatpush.msra.mxu0 0.0
        %1491 = vmatpush.msra.mxu0 0.0
        %1492 = vmatpush.msra.mxu0 0.0
        %1493 = vmatpush.msra.mxu0 0.0
        %1494 = vmatpush.msra.mxu0 0.0
        %1495 = vmatpush.msra.mxu0 0.0
        %1496 = vmatpush.msra.mxu0 0.0
        %1497 = vmatpush.msra.mxu0 0.0
        %1498 = vmatpush.msra.mxu0 %v1481
        %1499 = vmatpush.msra.mxu0 %v1480
        %1500 = vmatpush.msra.mxu0 %v1479
        %1501 = vmatpush.msra.mxu0 %v1478
        %1502 = vmatmul.f32.gmra.mxu0 %v1484
        %v1503 = vpop.f32.mrf.mxu0
        %v1504 = vadd.f32 %v1482, %v1503
        %1505 = vdwg.mxu0
        %v1506 = vadd.f32 %v1113, %v1504
        %v1507 = vsel %vm615, %v1506, 0.0
        %1508 = vadd.xlane.f32.xlu0 %v1507
        %v1509 = vpop.xlane.xlu0 %1508
        %v1510 = vmul.f32 %v1509, %v1006
        %v1511 = vsub.f32 %v1506, %v1510
        %v1512 = vmul.f32 %v1511, %v1511
        %v1513 = vsel %vm615, %v1512, 0.0
        %1514 = vadd.xlane.f32.xlu0 %v1513
        %v1515 = vpop.xlane.xlu0 %1514
        %v1516 = vmul.f32 %v1515, %v1006
        %v1517 = vadd.f32 %v1516, 1e-05
        %v1518 = vrsqrt.pop %v1517
        %v1519 = vmul.f32 %v1518, %v1517
        %v1520 = vmul.f32 %v1519, %v1518
        %v1521 = vmul.f32 0.5, %v1520
        %v1522 = vsub.f32 1.5, %v1521
        %v1523 = vmul.f32 %v1518, %v1522
        %vm1524 = vweird.f32 %v1517
        %vm1525 = vweird.f32 %v1518
        %vm1526 = vmor %vm1524, %vm1525
        %v1527 = vsel %vm1526, %v1518, %v1523
        %v1528 = vmul.f32 %v1511, %v1527
        %v1529 = vperm.slane %v1115, 1
        %v1530 = vmul.f32 %v1528, %v1529
        %v1531 = vperm.slane %v1115, 2
        %v1532 = vadd.f32 %v1530, %v1531
        %s1533 = scalar_lea.vmem [#allocation5], 32
        %v1534 = vld [vmem:[%s1533] sm:$0xff]
        %v1535 = vld [vmem:[%s1533 + $0x8] sm:$0xff]
        %v1536 = vld [vmem:[%s1533 + $0x10] sm:$0xff]
        %v1537 = vld [vmem:[%s1533 + $0x18] sm:$0xff]
        %v1538 = vperm.slane %v1115, 3
        %v1540 = vsel %vm615, %v1532, 0
        %1542 = vmatpush.msra.mxu0 0.0
        %1543 = vmatpush.msra.mxu0 0.0
        %1544 = vmatpush.msra.mxu0 0.0
        %1545 = vmatpush.msra.mxu0 0.0
        %1546 = vmatpush.msra.mxu0 0.0
        %1547 = vmatpush.msra.mxu0 0.0
        %1548 = vmatpush.msra.mxu0 0.0
        %1549 = vmatpush.msra.mxu0 0.0
        %1550 = vmatpush.msra.mxu0 0.0
        %1551 = vmatpush.msra.mxu0 0.0
        %1552 = vmatpush.msra.mxu0 0.0
        %1553 = vmatpush.msra.mxu0 0.0
        %1554 = vmatpush.msra.mxu0 %v1537
        %1555 = vmatpush.msra.mxu0 %v1536
        %1556 = vmatpush.msra.mxu0 %v1535
        %1557 = vmatpush.msra.mxu0 %v1534
        %1558 = vmatmul.f32.gmra.mxu0 %v1540
        %v1559 = vpop.f32.mrf.mxu0
        %v1560 = vadd.f32 %v1538, %v1559
        %1561 = vdwg.mxu0
        %v1562 = vmax.f32 %v1560, 0.0
        %s1563 = scalar_lea.vmem [#allocation7], 32
        %v1564 = vld [vmem:[%s1563] sm:$0xff]
        %v1565 = vld [vmem:[%s1563 + $0x8] sm:$0xff]
        %v1566 = vld [vmem:[%s1563 + $0x10] sm:$0xff]
        %v1567 = vld [vmem:[%s1563 + $0x18] sm:$0xff]
        %v1568 = vperm.slane %v1115, 4
        %v1570 = vsel %vm615, %v1562, 0
        %1572 = vmatpush.msra.mxu0 0.0
        %1573 = vmatpush.msra.mxu0 0.0
        %1574 = vmatpush.msra.mxu0 0.0
        %1575 = vmatpush.msra.mxu0 0.0
        %1576 = vmatpush.msra.mxu0 0.0
        %1577 = vmatpush.msra.mxu0 0.0
        %1578 = vmatpush.msra.mxu0 0.0
        %1579 = vmatpush.msra.mxu0 0.0
        %1580 = vmatpush.msra.mxu0 0.0
        %1581 = vmatpush.msra.mxu0 0.0
        %1582 = vmatpush.msra.mxu0 0.0
        %1583 = vmatpush.msra.mxu0 0.0
        %1584 = vmatpush.msra.mxu0 %v1567
        %1585 = vmatpush.msra.mxu0 %v1566
        %1586 = vmatpush.msra.mxu0 %v1565
        %1587 = vmatpush.msra.mxu0 %v1564
        %1588 = vmatmul.f32.gmra.mxu0 %v1570
        %v1589 = vpop.f32.mrf.mxu0
        %v1590 = vadd.f32 %v1568, %v1589
        %1591 = vdwg.mxu0
        %v1592 = vadd.f32 %v1532, %v1590
        %v1593 = vsel %vm615, %v1592, 0.0
        %1594 = vadd.xlane.f32.xlu0 %v1593
        %v1595 = vpop.xlane.xlu0 %1594
        %v1596 = vmul.f32 %v1595, %v1006
        %v1597 = vsub.f32 %v1592, %v1596
        %v1598 = vmul.f32 %v1597, %v1597
        %v1599 = vsel %vm615, %v1598, 0.0
        %1600 = vadd.xlane.f32.xlu0 %v1599
        %v1601 = vpop.xlane.xlu0 %1600
        %v1602 = vmul.f32 %v1601, %v1006
        %v1603 = vadd.f32 %v1602, 1e-05
        %v1604 = vrsqrt.pop %v1603
        %v1605 = vmul.f32 %v1604, %v1603
        %v1606 = vmul.f32 %v1605, %v1604
        %v1607 = vmul.f32 0.5, %v1606
        %v1608 = vsub.f32 1.5, %v1607
        %v1609 = vmul.f32 %v1604, %v1608
        %vm1610 = vweird.f32 %v1603
        %vm1611 = vweird.f32 %v1604
        %vm1612 = vmor %vm1610, %vm1611
        %v1613 = vsel %vm1612, %v1604, %v1609
        %v1614 = vmul.f32 %v1597, %v1613
        %v1615 = vperm.slane %v1115, 5
        %v1616 = vmul.f32 %v1614, %v1615
        %v1617 = vperm.slane %v1115, 6
        %v1618 = vadd.f32 %v1616, %v1617
        %v1619 = vsel %vm615, %v1618, 0.0
        %v1620 = vrot.slane %v1619, 4
        %v1621 = vadd.f32 %v1619, %v1620
        %v1622 = vrot.slane %v1621, 2
        %v1623 = vadd.f32 %v1621, %v1622
        %v1624 = vrot.slane %v1623, 1
        %v1625 = vadd.f32 %v1623, %v1624
        %v1626 = vrcp.pop 8.0
        %v1627 = vmul.f32 8.0, %v1626
        %v1628 = vsub.f32 1.0, %v1627
        %v1629 = vmul.f32 %v1626, %v1628
        %v1630 = vadd.f32 %v1626, %v1629
        %vm1631 = vweird.f32 %v1626
        %v1632 = vsel %vm1631, %v1626, %v1630
        %v1633 = vmul.f32 %v1625, %v1632
        %v1634 = vld [vmem:[%s9] sm:$0xff]
        %v1635 = vld [vmem:[%s9 + $0x8] sm:$0xff]
        %v1636 = vld [vmem:[%s9 + $0x10] sm:$0xff]
        %v1637 = vld [vmem:[%s9 + $0x18] sm:$0xff]
        %v1638 = vld [vmem:[#allocation2] sm:$0x1]
        %v1640 = vsel %vm615, %v1633, 0
        %1642 = vmatpush.msra.mxu0 0.0
        %1643 = vmatpush.msra.mxu0 0.0
        %1644 = vmatpush.msra.mxu0 0.0
        %1645 = vmatpush.msra.mxu0 0.0
        %1646 = vmatpush.msra.mxu0 0.0
        %1647 = vmatpush.msra.mxu0 0.0
        %1648 = vmatpush.msra.mxu0 0.0
        %1649 = vmatpush.msra.mxu0 0.0
        %1650 = vmatpush.msra.mxu0 0.0
        %1651 = vmatpush.msra.mxu0 0.0
        %1652 = vmatpush.msra.mxu0 0.0
        %1653 = vmatpush.msra.mxu0 0.0
        %1654 = vmatpush.msra.mxu0 %v1637
        %1655 = vmatpush.msra.mxu0 %v1636
        %1656 = vmatpush.msra.mxu0 %v1635
        %1657 = vmatpush.msra.mxu0 %v1634
        %1658 = vmatmul.f32.gmra.mxu0 %v1640
        %v1659 = vpop.f32.mrf.mxu0
        %v1660 = vadd.f32 %v1638, %v1659
        %1661 = vdwg.mxu0
        %v1662 = vxor.u32 %v1660, 2147483648
        %v1663 = vmul.f32 %v1662, 1.442695
        %v1664 = vpow.pop %v1663
        %v1665 = vadd.f32 %v1664, 1.0
        %v1666 = vrcp.pop %v1665
        %v1667 = vmul.f32 %v1665, %v1666
        %v1668 = vsub.f32 1.0, %v1667
        %v1669 = vmul.f32 %v1666, %v1668
        %v1670 = vadd.f32 %v1666, %v1669
        %vm1671 = vweird.f32 %v1665
        %vm1672 = vweird.f32 %v1666
        %vm1673 = vmor %vm1671, %vm1672
        %v1674 = vsel %vm1673, %v1666, %v1670
        %v1675 = vand.u32 2147483647, %v1665
        %vm1676 = vcmp.eq.f32.partialorder %v1675, 8.507059e+37
        %v1677 = vand.u32 %v1665, 2147483648
        %v1678 = vor.u32 1.1754944e-38, %v1677
        %v1679 = vsel %vm1676, %v1678, %v1674
        %v1680 = vmul.f32 1.0, %v1679
        %vm1681 = vcmask 0
        %1682 = vst.msk [vmem:[%s434] sm:$0x1] %vm1681, %v1680
        %p1683 = scmp.lt.s32.totalorder %s26, 1
        %s1684 = scalar_select %p1683, %s26, 1
        %s1685 = scalar_lea.vmem %s11, %s1684
        // Predicated region
        $region77: #{tpu_custom_call.1} parent=63 // pred_check
          %p1686 = pneg %p280
        $region78: #{tpu_custom_call.1} parent=63 // pred_check_branch
          %1688 = sbr.rel (%p1686) target = $region80
        $region79: #{tpu_custom_call.1} parent=63 // pred_region
          _
        $region80: #{tpu_custom_call.1} parent=63 // pred_fallthru
          _
      $region64: #{tpu_custom_call.1} parent=5 // pred_fallthru
        _
      %p1689 = scmp.le.s32.totalorder 2, %s21
      // Predicated region
      $region81: #{tpu_custom_call.1} parent=5 // pred_check
        %p1690 = pneg %p1689
      $region82: #{tpu_custom_call.1} parent=5 // pred_check_branch
        %1692 = sbr.rel (%p1690) target = $region84
      $region83: #{tpu_custom_call.1} parent=5 // pred_region
        %s1693 = ssub.s32 %s21, 2
        // Predicated region
        $region85: #{tpu_custom_call.1} parent=83 // pred_check
          %p1694 = pneg %p286
        $region86: #{tpu_custom_call.1} parent=83 // pred_check_branch
          %1696 = sbr.rel (%p1694) target = $region88
        $region87: #{tpu_custom_call.1} parent=83 // pred_region
          %p1697 = scmp.lt.s32.totalorder %s27, 1
          %s1698 = scalar_select %p1697, %s27, 1
          %s1699 = scalar_lea.vmem %s11, %s1698
        $region88: #{tpu_custom_call.1} parent=83 // pred_fallthru
          _
      $region84: #{tpu_custom_call.1} parent=5 // pred_fallthru
        _
    $region6: #{tpu_custom_call.1} parent=1 // loop_footer
      %s25 = sadd.s32 1, %s21
    $region7: #{tpu_custom_call.1} parent=1 // loop_footer_branch
      %20 = sbr.rel target = $region3
    $region8: #{tpu_custom_call.1} parent=1 // loop_exit
      _
    %1700 = vsyncpa [#allocation4], 1
    %s1701 = scalar_lea.sflag [#allocation4], 1
    %1702 = vsyncpa %s1701, 1
    %1703 = vsyncpa [#allocation6], 1

</llo_original>
